<compile_context>
chip_gen: v5e
topology: v5e:2x2
jax: 0.10.0
libtpu: 0.0.40
codegen_flags: <defaults>
</compile_context>

<pallas_src>
import math
from functools import partial

import jax
import jax.numpy as jnp
from jax.experimental import pallas as pl
from jax.experimental.pallas import tpu as pltpu


def _layernorm(x, gamma, beta, eps=1e-5):
    mu = jnp.mean(x, axis=-1, keepdims=True)
    var = jnp.mean((x - mu) ** 2, axis=-1, keepdims=True)
    return (x - mu) * jax.lax.rsqrt(var + eps) * gamma + beta


def residual_attention_kernel(*refs, num_heads, seq_len, seqs_per_block, use_mask):
    if use_mask:
        (x_ref,
         ln1_g_ref, ln1_b_ref,
         in_w_ref, in_b_ref,
         out_w_ref, out_b_ref,
         ln2_g_ref, ln2_b_ref,
         fc_w_ref, fc_b_ref,
         proj_w_ref, proj_b_ref,
         mask_ref,
         o_ref, attn_ref) = refs
    else:
        (x_ref,
         ln1_g_ref, ln1_b_ref,
         in_w_ref, in_b_ref,
         out_w_ref, out_b_ref,
         ln2_g_ref, ln2_b_ref,
         fc_w_ref, fc_b_ref,
         proj_w_ref, proj_b_ref,
         o_ref, attn_ref) = refs
        mask_ref = None

    f32 = jnp.float32
    bf16 = jnp.bfloat16

    x = x_ref[...]                              # (M, C) f32, M = seqs_per_block * seq_len
    M, C = x.shape
    H = num_heads
    N = seq_len
    Dh = C // H
    scale = 1.0 / math.sqrt(Dh)
    mask = mask_ref[...] if use_mask else None  # (N, N) f32 additive bias

    # ---- x = x + attention(ln_1(x)) ------------------------------------
    xn = _layernorm(x, ln1_g_ref[...], ln1_b_ref[...])                 # f32 elementwise
    qkv = jnp.dot(xn.astype(bf16), in_w_ref[...],
                  preferred_element_type=f32) + in_b_ref[...]          # (M, 3C) f32 acc
    q = qkv[:, 0 * C:1 * C] * scale
    k = qkv[:, 1 * C:2 * C]
    v = qkv[:, 2 * C:3 * C]

    # Per-(sequence, head) softmax attention, written straight into the
    # (M, C) scratch slab (no concatenate, shortest live ranges).
    for b in range(seqs_per_block):
        rows = slice(b * N, (b + 1) * N)
        for h in range(H):
            cols = slice(h * Dh, (h + 1) * Dh)
            qh = q[rows, cols].astype(bf16)                            # (N, Dh)
            kh = k[rows, cols].astype(bf16)
            vh = v[rows, cols].astype(bf16)
            s = jnp.dot(qh, kh.T, preferred_element_type=f32)          # (N, N) f32
            if use_mask:
                s = s + mask
            s = s - jnp.max(s, axis=-1, keepdims=True)
            p = jnp.exp(s)
            inv = pl.reciprocal(jnp.sum(p, axis=-1, keepdims=True), approx=True)
            p = p * inv
            attn_ref[rows, cols] = jnp.dot(p.astype(bf16), vh,
                                           preferred_element_type=f32)

    attn = jnp.dot(attn_ref[...].astype(bf16), out_w_ref[...],
                   preferred_element_type=f32) + out_b_ref[...]
    x = x + attn

    # ---- x = x + mlp(ln_2(x))   (c_fc -> QuickGELU -> c_proj) -----------
    xn2 = _layernorm(x, ln2_g_ref[...], ln2_b_ref[...])
    hdn = jnp.dot(xn2.astype(bf16), fc_w_ref[...],
                  preferred_element_type=f32) + fc_b_ref[...]
    hdn = hdn * jax.nn.sigmoid(1.702 * hdn)                            # QuickGELU (f32)
    mlp = jnp.dot(hdn.astype(bf16), proj_w_ref[...],
                  preferred_element_type=f32) + proj_b_ref[...]
    o_ref[...] = x + mlp


def _pick_seqs_per_block(B, N, max_rows=256):
    """Largest divisor of B s.t. Bt*N <= max_rows, preferring >=2 grid blocks."""
    divisors = [d for d in range(1, B + 1) if B % d == 0]
    fits = [d for d in divisors if d * N <= max_rows] or [1]
    multi = [d for d in fits if B // d >= 2]
    pool = multi if multi else fits
    return max(pool)


def residual_attention_block_bnc(x_bnc, params, num_heads, attn_mask=None,
                                 seqs_per_block=None):
    """Native (B, N, C) entry point (no wrapper transposes)."""
    B, N, C = x_bnc.shape
    Bt = seqs_per_block or _pick_seqs_per_block(B, N)
    assert B % Bt == 0
    G = B // Bt
    M = Bt * N
    use_mask = attn_mask is not None

    f32, bf16 = jnp.float32, jnp.bfloat16
    weights = [
        params["ln1_g"].astype(f32), params["ln1_b"].astype(f32),
        params["in_w"].astype(bf16), params["in_b"].astype(f32),
        params["out_w"].astype(bf16), params["out_b"].astype(f32),
        params["ln2_g"].astype(f32), params["ln2_b"].astype(f32),
        params["fc_w"].astype(bf16), params["fc_b"].astype(f32),
        params["proj_w"].astype(bf16), params["proj_b"].astype(f32),
    ]

    # Pack Bt sequences per grid step: (B, N, C) -> (G, Bt*N, C) is a free,
    # contiguous reshape in XLA.
    xg = x_bnc.astype(f32).reshape(G, M, C)

    def full_spec(arr):
        return pl.BlockSpec(arr.shape, lambda g, _nd=arr.ndim: (0,) * _nd)

    inputs = [xg] + weights
    in_specs = [pl.BlockSpec((None, M, C), lambda g: (g, 0, 0))]
    in_specs += [full_spec(w) for w in weights]
    if use_mask:
        mask = attn_mask.astype(f32)
        inputs.append(mask)
        in_specs.append(full_spec(mask))

    # VMEM budget: double-buffered x/out blocks + weights (default 2-deep
    # buffering) + attn scratch + room for the (M, 3C)/(M, 4C) f32 temporaries.
    w_bytes = sum(int(w.size) * w.dtype.itemsize for w in weights)
    if use_mask:
        w_bytes += N * N * 4
    act_bytes = M * C * 4
    est = 4 * act_bytes + 2 * w_bytes + act_bytes + 12 * M * C * 4
    vmem_limit = int(min(2 * est + (8 << 20), 64 << 20))

    out = pl.pallas_call(
        partial(residual_attention_kernel, num_heads=num_heads,
                seq_len=N, seqs_per_block=Bt, use_mask=use_mask),
        out_shape=jax.ShapeDtypeStruct((G, M, C), f32),
        grid=(G,),
        in_specs=in_specs,
        out_specs=pl.BlockSpec((None, M, C), lambda g: (g, 0, 0)),
        scratch_shapes=[pltpu.VMEM((M, C), jnp.float32)],
        compiler_params=pltpu.CompilerParams(
            dimension_semantics=("parallel",),
            vmem_limit_bytes=vmem_limit),
    )(*inputs)
    return out.reshape(B, N, C)


def residual_attention_block(x_nbc, params, num_heads, attn_mask=None):
    """(N_seq, B, C) interface matching the PyTorch module layout.
    Prefer residual_attention_block_bnc in model code to avoid the two
    full-tensor HBM transposes."""
    out = residual_attention_block_bnc(
        jnp.transpose(x_nbc, (1, 0, 2)), params, num_heads, attn_mask)
    return jnp.transpose(out, (1, 0, 2))


def init_params(key, C):
    ks = jax.random.split(key, 6)
    s = 0.02
    H4 = 4 * C
    return {
        "ln1_g":  jnp.ones((1, C), jnp.float32),
        "ln1_b":  jnp.zeros((1, C), jnp.float32),
        # weights stored pre-transposed as (in_features, out_features)
        "in_w":   s * jax.random.normal(ks[0], (C, 3 * C), jnp.float32),
        "in_b":   s * jax.random.normal(ks[1], (1, 3 * C), jnp.float32),
        "out_w":  s * jax.random.normal(ks[2], (C, C), jnp.float32),
        "out_b":  jnp.zeros((1, C), jnp.float32),
        "ln2_g":  jnp.ones((1, C), jnp.float32),
        "ln2_b":  jnp.zeros((1, C), jnp.float32),
        "fc_w":   s * jax.random.normal(ks[3], (C, H4), jnp.float32),
        "fc_b":   s * jax.random.normal(ks[4], (1, H4), jnp.float32),
        "proj_w": s * jax.random.normal(ks[5], (H4, C), jnp.float32),
        "proj_b": jnp.zeros((1, C), jnp.float32),
    }


def ref_forward(x_nbc, p, num_heads, attn_mask=None):
    """Pure-JAX f32 reference of the same forward pass."""
    x = jnp.transpose(x_nbc, (1, 0, 2)).astype(jnp.float32)   # (B, N, C)
    B, N, C = x.shape
    Dh = C // num_heads

    xn = _layernorm(x, p["ln1_g"], p["ln1_b"])
    qkv = xn @ p["in_w"] + p["in_b"]
    q, k, v = qkv[..., :C], qkv[..., C:2 * C], qkv[..., 2 * C:]
    q = q.reshape(B, N, num_heads, Dh)
    k = k.reshape(B, N, num_heads, Dh)
    v = v.reshape(B, N, num_heads, Dh)
    s = jnp.einsum("bnhd,bmhd->bhnm", q, k) / math.sqrt(Dh)
    if attn_mask is not None:
        s = s + attn_mask
    a = jax.nn.softmax(s, axis=-1)
    o = jnp.einsum("bhnm,bmhd->bnhd", a, v).reshape(B, N, C)
    x = x + (o @ p["out_w"] + p["out_b"])

    xn2 = _layernorm(x, p["ln2_g"], p["ln2_b"])
    h = xn2 @ p["fc_w"] + p["fc_b"]
    h = h * jax.nn.sigmoid(1.702 * h)
    x = x + (h @ p["proj_w"] + p["proj_b"])
    return jnp.transpose(x, (1, 0, 2))


if __name__ == "__main__":
    key = jax.random.PRNGKey(0)
    k_x, k_p = jax.random.split(key)

    N_seq, B, C = 8, 4, 32        # (seq, batch, channels), 4 heads of dim 8
    num_heads = 4

    x = jax.random.normal(k_x, (N_seq, B, C), jnp.float32)
    params = init_params(k_p, C)

    # ---- mask-free path (vision transformer / lang_tokens=None) ----------
    out = jax.block_until_ready(residual_attention_block(x, params, num_heads))
    ref = jax.block_until_ready(ref_forward(x, params, num_heads))
    assert out.shape == (N_seq, B, C)
    assert bool(jnp.all(jnp.isfinite(out)))
    assert bool(jnp.allclose(out, ref, rtol=2e-2, atol=2e-2)), "mismatch (no mask)"

    # ---- causal-mask path (CLIP text transformer) -------------------------
    causal = jnp.triu(jnp.full((N_seq, N_seq), -1e9, jnp.float32), k=1)
    out_m = jax.block_until_ready(
        residual_attention_block(x, params, num_heads, attn_mask=causal))
    ref_m = jax.block_until_ready(
        ref_forward(x, params, num_heads, attn_mask=causal))
    assert bool(jnp.all(jnp.isfinite(out_m)))
    assert bool(jnp.allclose(out_m, ref_m, rtol=2e-2, atol=2e-2)), "mismatch (causal)"

    print("KERNEL_OK")
</pallas_src>

<mosaic_0001>
module attributes {stable_mosaic.version = 11 : i64} {
  func.func @residual_attention_kernel(%arg0: i32, %arg1: memref<1x16x32xf32, #tpu.memory_space<vmem>>, %arg2: memref<1x32xf32, #tpu.memory_space<vmem>>, %arg3: memref<1x32xf32, #tpu.memory_space<vmem>>, %arg4: memref<32x96xbf16, #tpu.memory_space<vmem>>, %arg5: memref<1x96xf32, #tpu.memory_space<vmem>>, %arg6: memref<32x32xbf16, #tpu.memory_space<vmem>>, %arg7: memref<1x32xf32, #tpu.memory_space<vmem>>, %arg8: memref<1x32xf32, #tpu.memory_space<vmem>>, %arg9: memref<1x32xf32, #tpu.memory_space<vmem>>, %arg10: memref<32x128xbf16, #tpu.memory_space<vmem>>, %arg11: memref<1x128xf32, #tpu.memory_space<vmem>>, %arg12: memref<128x32xbf16, #tpu.memory_space<vmem>>, %arg13: memref<1x32xf32, #tpu.memory_space<vmem>>, %arg14: memref<1x16x32xf32, #tpu.memory_space<vmem>>, %arg15: memref<16x32xf32, #tpu.memory_space<vmem>>) attributes {dimension_semantics = [#tpu.dimension_semantics<parallel>], iteration_bounds = array<i64: 2>, scalar_prefetch = 0 : i64, scratch_operands = 1 : i64, tpu.core_type = #tpu.core_type<tc>, window_params = [{transform_indices = @transform_0, window_bounds = array<i64: 1, 16, 32>}, {pipeline_mode = #tpu.pipeline_mode<synchronous>, transform_indices = @transform_1, window_bounds = array<i64: 1, 32>}, {pipeline_mode = #tpu.pipeline_mode<synchronous>, transform_indices = @transform_2, window_bounds = array<i64: 1, 32>}, {pipeline_mode = #tpu.pipeline_mode<synchronous>, transform_indices = @transform_3, window_bounds = array<i64: 32, 96>}, {pipeline_mode = #tpu.pipeline_mode<synchronous>, transform_indices = @transform_4, window_bounds = array<i64: 1, 96>}, {pipeline_mode = #tpu.pipeline_mode<synchronous>, transform_indices = @transform_5, window_bounds = array<i64: 32, 32>}, {pipeline_mode = #tpu.pipeline_mode<synchronous>, transform_indices = @transform_6, window_bounds = array<i64: 1, 32>}, {pipeline_mode = #tpu.pipeline_mode<synchronous>, transform_indices = @transform_7, window_bounds = array<i64: 1, 32>}, {pipeline_mode = #tpu.pipeline_mode<synchronous>, transform_indices = @transform_8, window_bounds = array<i64: 1, 32>}, {pipeline_mode = #tpu.pipeline_mode<synchronous>, transform_indices = @transform_9, window_bounds = array<i64: 32, 128>}, {pipeline_mode = #tpu.pipeline_mode<synchronous>, transform_indices = @transform_10, window_bounds = array<i64: 1, 128>}, {pipeline_mode = #tpu.pipeline_mode<synchronous>, transform_indices = @transform_11, window_bounds = array<i64: 128, 32>}, {pipeline_mode = #tpu.pipeline_mode<synchronous>, transform_indices = @transform_12, window_bounds = array<i64: 1, 32>}, {transform_indices = @transform_13, window_bounds = array<i64: 1, 16, 32>}]} {
    %c0 = arith.constant 0 : index
    %c0_0 = arith.constant 0 : index
    %c0_1 = arith.constant 0 : index
    %0 = vector.load %arg1[%c0, %c0_0, %c0_1] : memref<1x16x32xf32, #tpu.memory_space<vmem>>, vector<1x16x32xf32>
    %1 = vector.shape_cast %0 : vector<1x16x32xf32> to vector<16x32xf32>
    %c0_2 = arith.constant 0 : index
    %c0_3 = arith.constant 0 : index
    %2 = vector.load %arg2[%c0_2, %c0_3] : memref<1x32xf32, #tpu.memory_space<vmem>>, vector<1x32xf32>
    %c0_4 = arith.constant 0 : index
    %c0_5 = arith.constant 0 : index
    %3 = vector.load %arg3[%c0_4, %c0_5] : memref<1x32xf32, #tpu.memory_space<vmem>>, vector<1x32xf32>
    %cst = arith.constant dense<0.000000e+00> : vector<16xf32>
    %4 = vector.multi_reduction <add>, %1, %cst [1] : vector<16x32xf32> to vector<16xf32>
    %5 = vector.shape_cast %4 : vector<16xf32> to vector<16x1xf32>
    %cst_6 = arith.constant 3.200000e+01 : f32
    %6 = vector.broadcast %cst_6 : f32 to vector<16x1xf32>
    %7 = arith.divf %5, %6 : vector<16x1xf32>
    %8 = vector.broadcast %7 : vector<16x1xf32> to vector<16x32xf32>
    %9 = arith.subf %1, %8 : vector<16x32xf32>
    %10 = arith.mulf %9, %9 : vector<16x32xf32>
    %cst_7 = arith.constant dense<0.000000e+00> : vector<16xf32>
    %11 = vector.multi_reduction <add>, %10, %cst_7 [1] : vector<16x32xf32> to vector<16xf32>
    %12 = vector.shape_cast %11 : vector<16xf32> to vector<16x1xf32>
    %cst_8 = arith.constant 3.200000e+01 : f32
    %13 = vector.broadcast %cst_8 : f32 to vector<16x1xf32>
    %14 = arith.divf %12, %13 : vector<16x1xf32>
    %15 = vector.broadcast %7 : vector<16x1xf32> to vector<16x32xf32>
    %16 = arith.subf %1, %15 : vector<16x32xf32>
    %cst_9 = arith.constant 9.99999974E-6 : f32
    %17 = vector.broadcast %cst_9 : f32 to vector<16x1xf32>
    %18 = arith.addf %14, %17 : vector<16x1xf32>
    %19 = math.rsqrt %18 : vector<16x1xf32>
    %20 = vector.broadcast %19 : vector<16x1xf32> to vector<16x32xf32>
    %21 = arith.mulf %16, %20 : vector<16x32xf32>
    %22 = vector.broadcast %2 : vector<1x32xf32> to vector<16x32xf32>
    %23 = arith.mulf %21, %22 : vector<16x32xf32>
    %24 = vector.broadcast %3 : vector<1x32xf32> to vector<16x32xf32>
    %25 = arith.addf %23, %24 : vector<16x32xf32>
    %26 = arith.truncf %25 : vector<16x32xf32> to vector<16x32xbf16>
    %c0_10 = arith.constant 0 : index
    %c0_11 = arith.constant 0 : index
    %27 = vector.load %arg4[%c0_10, %c0_11] : memref<32x96xbf16, #tpu.memory_space<vmem>>, vector<32x96xbf16>
    %cst_12 = arith.constant dense<0.000000e+00> : vector<16x96xf32>
    %28 = tpu.matmul %26, %27, %cst_12 {dimension_numbers = #tpu.dot_dimension_numbers<[1], [0], [0], [1], [0, 0, 1, 1], [], []>} : vector<16x32xbf16>, vector<32x96xbf16>, vector<16x96xf32> -> vector<16x96xf32>
    %c0_13 = arith.constant 0 : index
    %c0_14 = arith.constant 0 : index
    %29 = vector.load %arg5[%c0_13, %c0_14] : memref<1x96xf32, #tpu.memory_space<vmem>>, vector<1x96xf32>
    %30 = vector.broadcast %29 : vector<1x96xf32> to vector<16x96xf32>
    %31 = arith.addf %28, %30 : vector<16x96xf32>
    %32 = vector.extract_strided_slice %31 {offsets = [0, 0], sizes = [16, 32], strides = [1, 1]} : vector<16x96xf32> to vector<16x32xf32>
    %cst_15 = arith.constant 0.353553385 : f32
    %33 = vector.broadcast %cst_15 : f32 to vector<16x32xf32>
    %34 = arith.mulf %32, %33 : vector<16x32xf32>
    %35 = vector.extract_strided_slice %31 {offsets = [0, 32], sizes = [16, 32], strides = [1, 1]} : vector<16x96xf32> to vector<16x32xf32>
    %36 = vector.extract_strided_slice %31 {offsets = [0, 64], sizes = [16, 32], strides = [1, 1]} : vector<16x96xf32> to vector<16x32xf32>
    %37 = vector.extract_strided_slice %34 {offsets = [0, 0], sizes = [8, 8], strides = [1, 1]} : vector<16x32xf32> to vector<8x8xf32>
    %38 = arith.truncf %37 : vector<8x8xf32> to vector<8x8xbf16>
    %39 = vector.extract_strided_slice %35 {offsets = [0, 0], sizes = [8, 8], strides = [1, 1]} : vector<16x32xf32> to vector<8x8xf32>
    %40 = arith.truncf %39 : vector<8x8xf32> to vector<8x8xbf16>
    %41 = vector.extract_strided_slice %36 {offsets = [0, 0], sizes = [8, 8], strides = [1, 1]} : vector<16x32xf32> to vector<8x8xf32>
    %42 = arith.truncf %41 : vector<8x8xf32> to vector<8x8xbf16>
    %43 = tpu.transpose %40, [1, 0] : vector<8x8xbf16> -> vector<8x8xbf16>
    %cst_16 = arith.constant dense<0.000000e+00> : vector<8x8xf32>
    %44 = tpu.matmul %38, %43, %cst_16 {dimension_numbers = #tpu.dot_dimension_numbers<[1], [0], [0], [1], [0, 0, 1, 1], [], []>} : vector<8x8xbf16>, vector<8x8xbf16>, vector<8x8xf32> -> vector<8x8xf32>
    %cst_17 = arith.constant dense<0xFF800000> : vector<8xf32>
    %45 = vector.multi_reduction <maximumf>, %44, %cst_17 [1] : vector<8x8xf32> to vector<8xf32>
    %46 = vector.shape_cast %45 : vector<8xf32> to vector<8x1xf32>
    %47 = vector.broadcast %46 : vector<8x1xf32> to vector<8x8xf32>
    %48 = arith.subf %44, %47 : vector<8x8xf32>
    %49 = math.exp %48 : vector<8x8xf32>
    %cst_18 = arith.constant dense<0.000000e+00> : vector<8xf32>
    %50 = vector.multi_reduction <add>, %49, %cst_18 [1] : vector<8x8xf32> to vector<8xf32>
    %51 = vector.shape_cast %50 : vector<8xf32> to vector<8x1xf32>
    %52 = tpu.reciprocal %51 {approx = true} : vector<8x1xf32> -> vector<8x1xf32>
    %53 = vector.broadcast %52 : vector<8x1xf32> to vector<8x8xf32>
    %54 = arith.mulf %49, %53 : vector<8x8xf32>
    %55 = arith.truncf %54 : vector<8x8xf32> to vector<8x8xbf16>
    %cst_19 = arith.constant dense<0.000000e+00> : vector<8x8xf32>
    %56 = tpu.matmul %55, %42, %cst_19 {dimension_numbers = #tpu.dot_dimension_numbers<[1], [0], [0], [1], [0, 0, 1, 1], [], []>} : vector<8x8xbf16>, vector<8x8xbf16>, vector<8x8xf32> -> vector<8x8xf32>
    %c0_20 = arith.constant 0 : index
    %c0_21 = arith.constant 0 : index
    %57 = vector.load %arg15[%c0_20, %c0_21] : memref<16x32xf32, #tpu.memory_space<vmem>>, vector<8x8xf32>
    tpu.vector_store %arg15[%c0_20, %c0_21], %56 {strides = array<i32>} : memref<16x32xf32, #tpu.memory_space<vmem>>, vector<8x8xf32>,
    %58 = vector.extract_strided_slice %34 {offsets = [0, 8], sizes = [8, 8], strides = [1, 1]} : vector<16x32xf32> to vector<8x8xf32>
    %59 = arith.truncf %58 : vector<8x8xf32> to vector<8x8xbf16>
    %60 = vector.extract_strided_slice %35 {offsets = [0, 8], sizes = [8, 8], strides = [1, 1]} : vector<16x32xf32> to vector<8x8xf32>
    %61 = arith.truncf %60 : vector<8x8xf32> to vector<8x8xbf16>
    %62 = vector.extract_strided_slice %36 {offsets = [0, 8], sizes = [8, 8], strides = [1, 1]} : vector<16x32xf32> to vector<8x8xf32>
    %63 = arith.truncf %62 : vector<8x8xf32> to vector<8x8xbf16>
    %64 = tpu.transpose %61, [1, 0] : vector<8x8xbf16> -> vector<8x8xbf16>
    %cst_22 = arith.constant dense<0.000000e+00> : vector<8x8xf32>
    %65 = tpu.matmul %59, %64, %cst_22 {dimension_numbers = #tpu.dot_dimension_numbers<[1], [0], [0], [1], [0, 0, 1, 1], [], []>} : vector<8x8xbf16>, vector<8x8xbf16>, vector<8x8xf32> -> vector<8x8xf32>
    %cst_23 = arith.constant dense<0xFF800000> : vector<8xf32>
    %66 = vector.multi_reduction <maximumf>, %65, %cst_23 [1] : vector<8x8xf32> to vector<8xf32>
    %67 = vector.shape_cast %66 : vector<8xf32> to vector<8x1xf32>
    %68 = vector.broadcast %67 : vector<8x1xf32> to vector<8x8xf32>
    %69 = arith.subf %65, %68 : vector<8x8xf32>
    %70 = math.exp %69 : vector<8x8xf32>
    %cst_24 = arith.constant dense<0.000000e+00> : vector<8xf32>
    %71 = vector.multi_reduction <add>, %70, %cst_24 [1] : vector<8x8xf32> to vector<8xf32>
    %72 = vector.shape_cast %71 : vector<8xf32> to vector<8x1xf32>
    %73 = tpu.reciprocal %72 {approx = true} : vector<8x1xf32> -> vector<8x1xf32>
    %74 = vector.broadcast %73 : vector<8x1xf32> to vector<8x8xf32>
    %75 = arith.mulf %70, %74 : vector<8x8xf32>
    %76 = arith.truncf %75 : vector<8x8xf32> to vector<8x8xbf16>
    %cst_25 = arith.constant dense<0.000000e+00> : vector<8x8xf32>
    %77 = tpu.matmul %76, %63, %cst_25 {dimension_numbers = #tpu.dot_dimension_numbers<[1], [0], [0], [1], [0, 0, 1, 1], [], []>} : vector<8x8xbf16>, vector<8x8xbf16>, vector<8x8xf32> -> vector<8x8xf32>
    %c0_26 = arith.constant 0 : index
    %c8 = arith.constant 8 : index
    %78 = vector.load %arg15[%c0_26, %c8] : memref<16x32xf32, #tpu.memory_space<vmem>>, vector<8x8xf32>
    tpu.vector_store %arg15[%c0_26, %c8], %77 {strides = array<i32>} : memref<16x32xf32, #tpu.memory_space<vmem>>, vector<8x8xf32>,
    %79 = vector.extract_strided_slice %34 {offsets = [0, 16], sizes = [8, 8], strides = [1, 1]} : vector<16x32xf32> to vector<8x8xf32>
    %80 = arith.truncf %79 : vector<8x8xf32> to vector<8x8xbf16>
    %81 = vector.extract_strided_slice %35 {offsets = [0, 16], sizes = [8, 8], strides = [1, 1]} : vector<16x32xf32> to vector<8x8xf32>
    %82 = arith.truncf %81 : vector<8x8xf32> to vector<8x8xbf16>
    %83 = vector.extract_strided_slice %36 {offsets = [0, 16], sizes = [8, 8], strides = [1, 1]} : vector<16x32xf32> to vector<8x8xf32>
    %84 = arith.truncf %83 : vector<8x8xf32> to vector<8x8xbf16>
    %85 = tpu.transpose %82, [1, 0] : vector<8x8xbf16> -> vector<8x8xbf16>
    %cst_27 = arith.constant dense<0.000000e+00> : vector<8x8xf32>
    %86 = tpu.matmul %80, %85, %cst_27 {dimension_numbers = #tpu.dot_dimension_numbers<[1], [0], [0], [1], [0, 0, 1, 1], [], []>} : vector<8x8xbf16>, vector<8x8xbf16>, vector<8x8xf32> -> vector<8x8xf32>
    %cst_28 = arith.constant dense<0xFF800000> : vector<8xf32>
    %87 = vector.multi_reduction <maximumf>, %86, %cst_28 [1] : vector<8x8xf32> to vector<8xf32>
    %88 = vector.shape_cast %87 : vector<8xf32> to vector<8x1xf32>
    %89 = vector.broadcast %88 : vector<8x1xf32> to vector<8x8xf32>
    %90 = arith.subf %86, %89 : vector<8x8xf32>
    %91 = math.exp %90 : vector<8x8xf32>
    %cst_29 = arith.constant dense<0.000000e+00> : vector<8xf32>
    %92 = vector.multi_reduction <add>, %91, %cst_29 [1] : vector<8x8xf32> to vector<8xf32>
    %93 = vector.shape_cast %92 : vector<8xf32> to vector<8x1xf32>
    %94 = tpu.reciprocal %93 {approx = true} : vector<8x1xf32> -> vector<8x1xf32>
    %95 = vector.broadcast %94 : vector<8x1xf32> to vector<8x8xf32>
    %96 = arith.mulf %91, %95 : vector<8x8xf32>
    %97 = arith.truncf %96 : vector<8x8xf32> to vector<8x8xbf16>
    %cst_30 = arith.constant dense<0.000000e+00> : vector<8x8xf32>
    %98 = tpu.matmul %97, %84, %cst_30 {dimension_numbers = #tpu.dot_dimension_numbers<[1], [0], [0], [1], [0, 0, 1, 1], [], []>} : vector<8x8xbf16>, vector<8x8xbf16>, vector<8x8xf32> -> vector<8x8xf32>
    %c0_31 = arith.constant 0 : index
    %c16 = arith.constant 16 : index
    %99 = vector.load %arg15[%c0_31, %c16] : memref<16x32xf32, #tpu.memory_space<vmem>>, vector<8x8xf32>
    tpu.vector_store %arg15[%c0_31, %c16], %98 {strides = array<i32>} : memref<16x32xf32, #tpu.memory_space<vmem>>, vector<8x8xf32>,
    %100 = vector.extract_strided_slice %34 {offsets = [0, 24], sizes = [8, 8], strides = [1, 1]} : vector<16x32xf32> to vector<8x8xf32>
    %101 = arith.truncf %100 : vector<8x8xf32> to vector<8x8xbf16>
    %102 = vector.extract_strided_slice %35 {offsets = [0, 24], sizes = [8, 8], strides = [1, 1]} : vector<16x32xf32> to vector<8x8xf32>
    %103 = arith.truncf %102 : vector<8x8xf32> to vector<8x8xbf16>
    %104 = vector.extract_strided_slice %36 {offsets = [0, 24], sizes = [8, 8], strides = [1, 1]} : vector<16x32xf32> to vector<8x8xf32>
    %105 = arith.truncf %104 : vector<8x8xf32> to vector<8x8xbf16>
    %106 = tpu.transpose %103, [1, 0] : vector<8x8xbf16> -> vector<8x8xbf16>
    %cst_32 = arith.constant dense<0.000000e+00> : vector<8x8xf32>
    %107 = tpu.matmul %101, %106, %cst_32 {dimension_numbers = #tpu.dot_dimension_numbers<[1], [0], [0], [1], [0, 0, 1, 1], [], []>} : vector<8x8xbf16>, vector<8x8xbf16>, vector<8x8xf32> -> vector<8x8xf32>
    %cst_33 = arith.constant dense<0xFF800000> : vector<8xf32>
    %108 = vector.multi_reduction <maximumf>, %107, %cst_33 [1] : vector<8x8xf32> to vector<8xf32>
    %109 = vector.shape_cast %108 : vector<8xf32> to vector<8x1xf32>
    %110 = vector.broadcast %109 : vector<8x1xf32> to vector<8x8xf32>
    %111 = arith.subf %107, %110 : vector<8x8xf32>
    %112 = math.exp %111 : vector<8x8xf32>
    %cst_34 = arith.constant dense<0.000000e+00> : vector<8xf32>
    %113 = vector.multi_reduction <add>, %112, %cst_34 [1] : vector<8x8xf32> to vector<8xf32>
    %114 = vector.shape_cast %113 : vector<8xf32> to vector<8x1xf32>
    %115 = tpu.reciprocal %114 {approx = true} : vector<8x1xf32> -> vector<8x1xf32>
    %116 = vector.broadcast %115 : vector<8x1xf32> to vector<8x8xf32>
    %117 = arith.mulf %112, %116 : vector<8x8xf32>
    %118 = arith.truncf %117 : vector<8x8xf32> to vector<8x8xbf16>
    %cst_35 = arith.constant dense<0.000000e+00> : vector<8x8xf32>
    %119 = tpu.matmul %118, %105, %cst_35 {dimension_numbers = #tpu.dot_dimension_numbers<[1], [0], [0], [1], [0, 0, 1, 1], [], []>} : vector<8x8xbf16>, vector<8x8xbf16>, vector<8x8xf32> -> vector<8x8xf32>
    %c0_36 = arith.constant 0 : index
    %c24 = arith.constant 24 : index
    %120 = vector.load %arg15[%c0_36, %c24] : memref<16x32xf32, #tpu.memory_space<vmem>>, vector<8x8xf32>
    tpu.vector_store %arg15[%c0_36, %c24], %119 {strides = array<i32>} : memref<16x32xf32, #tpu.memory_space<vmem>>, vector<8x8xf32>,
    %121 = vector.extract_strided_slice %34 {offsets = [8, 0], sizes = [8, 8], strides = [1, 1]} : vector<16x32xf32> to vector<8x8xf32>
    %122 = arith.truncf %121 : vector<8x8xf32> to vector<8x8xbf16>
    %123 = vector.extract_strided_slice %35 {offsets = [8, 0], sizes = [8, 8], strides = [1, 1]} : vector<16x32xf32> to vector<8x8xf32>
    %124 = arith.truncf %123 : vector<8x8xf32> to vector<8x8xbf16>
    %125 = vector.extract_strided_slice %36 {offsets = [8, 0], sizes = [8, 8], strides = [1, 1]} : vector<16x32xf32> to vector<8x8xf32>
    %126 = arith.truncf %125 : vector<8x8xf32> to vector<8x8xbf16>
    %127 = tpu.transpose %124, [1, 0] : vector<8x8xbf16> -> vector<8x8xbf16>
    %cst_37 = arith.constant dense<0.000000e+00> : vector<8x8xf32>
    %128 = tpu.matmul %122, %127, %cst_37 {dimension_numbers = #tpu.dot_dimension_numbers<[1], [0], [0], [1], [0, 0, 1, 1], [], []>} : vector<8x8xbf16>, vector<8x8xbf16>, vector<8x8xf32> -> vector<8x8xf32>
    %cst_38 = arith.constant dense<0xFF800000> : vector<8xf32>
    %129 = vector.multi_reduction <maximumf>, %128, %cst_38 [1] : vector<8x8xf32> to vector<8xf32>
    %130 = vector.shape_cast %129 : vector<8xf32> to vector<8x1xf32>
    %131 = vector.broadcast %130 : vector<8x1xf32> to vector<8x8xf32>
    %132 = arith.subf %128, %131 : vector<8x8xf32>
    %133 = math.exp %132 : vector<8x8xf32>
    %cst_39 = arith.constant dense<0.000000e+00> : vector<8xf32>
    %134 = vector.multi_reduction <add>, %133, %cst_39 [1] : vector<8x8xf32> to vector<8xf32>
    %135 = vector.shape_cast %134 : vector<8xf32> to vector<8x1xf32>
    %136 = tpu.reciprocal %135 {approx = true} : vector<8x1xf32> -> vector<8x1xf32>
    %137 = vector.broadcast %136 : vector<8x1xf32> to vector<8x8xf32>
    %138 = arith.mulf %133, %137 : vector<8x8xf32>
    %139 = arith.truncf %138 : vector<8x8xf32> to vector<8x8xbf16>
    %cst_40 = arith.constant dense<0.000000e+00> : vector<8x8xf32>
    %140 = tpu.matmul %139, %126, %cst_40 {dimension_numbers = #tpu.dot_dimension_numbers<[1], [0], [0], [1], [0, 0, 1, 1], [], []>} : vector<8x8xbf16>, vector<8x8xbf16>, vector<8x8xf32> -> vector<8x8xf32>
    %c8_41 = arith.constant 8 : index
    %c0_42 = arith.constant 0 : index
    %141 = vector.load %arg15[%c8_41, %c0_42] : memref<16x32xf32, #tpu.memory_space<vmem>>, vector<8x8xf32>
    tpu.vector_store %arg15[%c8_41, %c0_42], %140 {strides = array<i32>} : memref<16x32xf32, #tpu.memory_space<vmem>>, vector<8x8xf32>,
    %142 = vector.extract_strided_slice %34 {offsets = [8, 8], sizes = [8, 8], strides = [1, 1]} : vector<16x32xf32> to vector<8x8xf32>
    %143 = arith.truncf %142 : vector<8x8xf32> to vector<8x8xbf16>
    %144 = vector.extract_strided_slice %35 {offsets = [8, 8], sizes = [8, 8], strides = [1, 1]} : vector<16x32xf32> to vector<8x8xf32>
    %145 = arith.truncf %144 : vector<8x8xf32> to vector<8x8xbf16>
    %146 = vector.extract_strided_slice %36 {offsets = [8, 8], sizes = [8, 8], strides = [1, 1]} : vector<16x32xf32> to vector<8x8xf32>
    %147 = arith.truncf %146 : vector<8x8xf32> to vector<8x8xbf16>
    %148 = tpu.transpose %145, [1, 0] : vector<8x8xbf16> -> vector<8x8xbf16>
    %cst_43 = arith.constant dense<0.000000e+00> : vector<8x8xf32>
    %149 = tpu.matmul %143, %148, %cst_43 {dimension_numbers = #tpu.dot_dimension_numbers<[1], [0], [0], [1], [0, 0, 1, 1], [], []>} : vector<8x8xbf16>, vector<8x8xbf16>, vector<8x8xf32> -> vector<8x8xf32>
    %cst_44 = arith.constant dense<0xFF800000> : vector<8xf32>
    %150 = vector.multi_reduction <maximumf>, %149, %cst_44 [1] : vector<8x8xf32> to vector<8xf32>
    %151 = vector.shape_cast %150 : vector<8xf32> to vector<8x1xf32>
    %152 = vector.broadcast %151 : vector<8x1xf32> to vector<8x8xf32>
    %153 = arith.subf %149, %152 : vector<8x8xf32>
    %154 = math.exp %153 : vector<8x8xf32>
    %cst_45 = arith.constant dense<0.000000e+00> : vector<8xf32>
    %155 = vector.multi_reduction <add>, %154, %cst_45 [1] : vector<8x8xf32> to vector<8xf32>
    %156 = vector.shape_cast %155 : vector<8xf32> to vector<8x1xf32>
    %157 = tpu.reciprocal %156 {approx = true} : vector<8x1xf32> -> vector<8x1xf32>
    %158 = vector.broadcast %157 : vector<8x1xf32> to vector<8x8xf32>
    %159 = arith.mulf %154, %158 : vector<8x8xf32>
    %160 = arith.truncf %159 : vector<8x8xf32> to vector<8x8xbf16>
    %cst_46 = arith.constant dense<0.000000e+00> : vector<8x8xf32>
    %161 = tpu.matmul %160, %147, %cst_46 {dimension_numbers = #tpu.dot_dimension_numbers<[1], [0], [0], [1], [0, 0, 1, 1], [], []>} : vector<8x8xbf16>, vector<8x8xbf16>, vector<8x8xf32> -> vector<8x8xf32>
    %c8_47 = arith.constant 8 : index
    %c8_48 = arith.constant 8 : index
    %162 = vector.load %arg15[%c8_47, %c8_48] : memref<16x32xf32, #tpu.memory_space<vmem>>, vector<8x8xf32>
    tpu.vector_store %arg15[%c8_47, %c8_48], %161 {strides = array<i32>} : memref<16x32xf32, #tpu.memory_space<vmem>>, vector<8x8xf32>,
    %163 = vector.extract_strided_slice %34 {offsets = [8, 16], sizes = [8, 8], strides = [1, 1]} : vector<16x32xf32> to vector<8x8xf32>
    %164 = arith.truncf %163 : vector<8x8xf32> to vector<8x8xbf16>
    %165 = vector.extract_strided_slice %35 {offsets = [8, 16], sizes = [8, 8], strides = [1, 1]} : vector<16x32xf32> to vector<8x8xf32>
    %166 = arith.truncf %165 : vector<8x8xf32> to vector<8x8xbf16>
    %167 = vector.extract_strided_slice %36 {offsets = [8, 16], sizes = [8, 8], strides = [1, 1]} : vector<16x32xf32> to vector<8x8xf32>
    %168 = arith.truncf %167 : vector<8x8xf32> to vector<8x8xbf16>
    %169 = tpu.transpose %166, [1, 0] : vector<8x8xbf16> -> vector<8x8xbf16>
    %cst_49 = arith.constant dense<0.000000e+00> : vector<8x8xf32>
    %170 = tpu.matmul %164, %169, %cst_49 {dimension_numbers = #tpu.dot_dimension_numbers<[1], [0], [0], [1], [0, 0, 1, 1], [], []>} : vector<8x8xbf16>, vector<8x8xbf16>, vector<8x8xf32> -> vector<8x8xf32>
    %cst_50 = arith.constant dense<0xFF800000> : vector<8xf32>
    %171 = vector.multi_reduction <maximumf>, %170, %cst_50 [1] : vector<8x8xf32> to vector<8xf32>
    %172 = vector.shape_cast %171 : vector<8xf32> to vector<8x1xf32>
    %173 = vector.broadcast %172 : vector<8x1xf32> to vector<8x8xf32>
    %174 = arith.subf %170, %173 : vector<8x8xf32>
    %175 = math.exp %174 : vector<8x8xf32>
    %cst_51 = arith.constant dense<0.000000e+00> : vector<8xf32>
    %176 = vector.multi_reduction <add>, %175, %cst_51 [1] : vector<8x8xf32> to vector<8xf32>
    %177 = vector.shape_cast %176 : vector<8xf32> to vector<8x1xf32>
    %178 = tpu.reciprocal %177 {approx = true} : vector<8x1xf32> -> vector<8x1xf32>
    %179 = vector.broadcast %178 : vector<8x1xf32> to vector<8x8xf32>
    %180 = arith.mulf %175, %179 : vector<8x8xf32>
    %181 = arith.truncf %180 : vector<8x8xf32> to vector<8x8xbf16>
    %cst_52 = arith.constant dense<0.000000e+00> : vector<8x8xf32>
    %182 = tpu.matmul %181, %168, %cst_52 {dimension_numbers = #tpu.dot_dimension_numbers<[1], [0], [0], [1], [0, 0, 1, 1], [], []>} : vector<8x8xbf16>, vector<8x8xbf16>, vector<8x8xf32> -> vector<8x8xf32>
    %c8_53 = arith.constant 8 : index
    %c16_54 = arith.constant 16 : index
    %183 = vector.load %arg15[%c8_53, %c16_54] : memref<16x32xf32, #tpu.memory_space<vmem>>, vector<8x8xf32>
    tpu.vector_store %arg15[%c8_53, %c16_54], %182 {strides = array<i32>} : memref<16x32xf32, #tpu.memory_space<vmem>>, vector<8x8xf32>,
    %184 = vector.extract_strided_slice %34 {offsets = [8, 24], sizes = [8, 8], strides = [1, 1]} : vector<16x32xf32> to vector<8x8xf32>
    %185 = arith.truncf %184 : vector<8x8xf32> to vector<8x8xbf16>
    %186 = vector.extract_strided_slice %35 {offsets = [8, 24], sizes = [8, 8], strides = [1, 1]} : vector<16x32xf32> to vector<8x8xf32>
    %187 = arith.truncf %186 : vector<8x8xf32> to vector<8x8xbf16>
    %188 = vector.extract_strided_slice %36 {offsets = [8, 24], sizes = [8, 8], strides = [1, 1]} : vector<16x32xf32> to vector<8x8xf32>
    %189 = arith.truncf %188 : vector<8x8xf32> to vector<8x8xbf16>
    %190 = tpu.transpose %187, [1, 0] : vector<8x8xbf16> -> vector<8x8xbf16>
    %cst_55 = arith.constant dense<0.000000e+00> : vector<8x8xf32>
    %191 = tpu.matmul %185, %190, %cst_55 {dimension_numbers = #tpu.dot_dimension_numbers<[1], [0], [0], [1], [0, 0, 1, 1], [], []>} : vector<8x8xbf16>, vector<8x8xbf16>, vector<8x8xf32> -> vector<8x8xf32>
    %cst_56 = arith.constant dense<0xFF800000> : vector<8xf32>
    %192 = vector.multi_reduction <maximumf>, %191, %cst_56 [1] : vector<8x8xf32> to vector<8xf32>
    %193 = vector.shape_cast %192 : vector<8xf32> to vector<8x1xf32>
    %194 = vector.broadcast %193 : vector<8x1xf32> to vector<8x8xf32>
    %195 = arith.subf %191, %194 : vector<8x8xf32>
    %196 = math.exp %195 : vector<8x8xf32>
    %cst_57 = arith.constant dense<0.000000e+00> : vector<8xf32>
    %197 = vector.multi_reduction <add>, %196, %cst_57 [1] : vector<8x8xf32> to vector<8xf32>
    %198 = vector.shape_cast %197 : vector<8xf32> to vector<8x1xf32>
    %199 = tpu.reciprocal %198 {approx = true} : vector<8x1xf32> -> vector<8x1xf32>
    %200 = vector.broadcast %199 : vector<8x1xf32> to vector<8x8xf32>
    %201 = arith.mulf %196, %200 : vector<8x8xf32>
    %202 = arith.truncf %201 : vector<8x8xf32> to vector<8x8xbf16>
    %cst_58 = arith.constant dense<0.000000e+00> : vector<8x8xf32>
    %203 = tpu.matmul %202, %189, %cst_58 {dimension_numbers = #tpu.dot_dimension_numbers<[1], [0], [0], [1], [0, 0, 1, 1], [], []>} : vector<8x8xbf16>, vector<8x8xbf16>, vector<8x8xf32> -> vector<8x8xf32>
    %c8_59 = arith.constant 8 : index
    %c24_60 = arith.constant 24 : index
    %204 = vector.load %arg15[%c8_59, %c24_60] : memref<16x32xf32, #tpu.memory_space<vmem>>, vector<8x8xf32>
    tpu.vector_store %arg15[%c8_59, %c24_60], %203 {strides = array<i32>} : memref<16x32xf32, #tpu.memory_space<vmem>>, vector<8x8xf32>,
    %c0_61 = arith.constant 0 : index
    %c0_62 = arith.constant 0 : index
    %205 = vector.load %arg15[%c0_61, %c0_62] : memref<16x32xf32, #tpu.memory_space<vmem>>, vector<16x32xf32>
    %206 = arith.truncf %205 : vector<16x32xf32> to vector<16x32xbf16>
    %c0_63 = arith.constant 0 : index
    %c0_64 = arith.constant 0 : index
    %207 = vector.load %arg6[%c0_63, %c0_64] : memref<32x32xbf16, #tpu.memory_space<vmem>>, vector<32x32xbf16>
    %cst_65 = arith.constant dense<0.000000e+00> : vector<16x32xf32>
    %208 = tpu.matmul %206, %207, %cst_65 {dimension_numbers = #tpu.dot_dimension_numbers<[1], [0], [0], [1], [0, 0, 1, 1], [], []>} : vector<16x32xbf16>, vector<32x32xbf16>, vector<16x32xf32> -> vector<16x32xf32>
    %c0_66 = arith.constant 0 : index
    %c0_67 = arith.constant 0 : index
    %209 = vector.load %arg7[%c0_66, %c0_67] : memref<1x32xf32, #tpu.memory_space<vmem>>, vector<1x32xf32>
    %210 = vector.broadcast %209 : vector<1x32xf32> to vector<16x32xf32>
    %211 = arith.addf %208, %210 : vector<16x32xf32>
    %212 = arith.addf %1, %211 : vector<16x32xf32>
    %c0_68 = arith.constant 0 : index
    %c0_69 = arith.constant 0 : index
    %213 = vector.load %arg8[%c0_68, %c0_69] : memref<1x32xf32, #tpu.memory_space<vmem>>, vector<1x32xf32>
    %c0_70 = arith.constant 0 : index
    %c0_71 = arith.constant 0 : index
    %214 = vector.load %arg9[%c0_70, %c0_71] : memref<1x32xf32, #tpu.memory_space<vmem>>, vector<1x32xf32>
    %cst_72 = arith.constant dense<0.000000e+00> : vector<16xf32>
    %215 = vector.multi_reduction <add>, %212, %cst_72 [1] : vector<16x32xf32> to vector<16xf32>
    %216 = vector.shape_cast %215 : vector<16xf32> to vector<16x1xf32>
    %cst_73 = arith.constant 3.200000e+01 : f32
    %217 = vector.broadcast %cst_73 : f32 to vector<16x1xf32>
    %218 = arith.divf %216, %217 : vector<16x1xf32>
    %219 = vector.broadcast %218 : vector<16x1xf32> to vector<16x32xf32>
    %220 = arith.subf %212, %219 : vector<16x32xf32>
    %221 = arith.mulf %220, %220 : vector<16x32xf32>
    %cst_74 = arith.constant dense<0.000000e+00> : vector<16xf32>
    %222 = vector.multi_reduction <add>, %221, %cst_74 [1] : vector<16x32xf32> to vector<16xf32>
    %223 = vector.shape_cast %222 : vector<16xf32> to vector<16x1xf32>
    %cst_75 = arith.constant 3.200000e+01 : f32
    %224 = vector.broadcast %cst_75 : f32 to vector<16x1xf32>
    %225 = arith.divf %223, %224 : vector<16x1xf32>
    %226 = vector.broadcast %218 : vector<16x1xf32> to vector<16x32xf32>
    %227 = arith.subf %212, %226 : vector<16x32xf32>
    %cst_76 = arith.constant 9.99999974E-6 : f32
    %228 = vector.broadcast %cst_76 : f32 to vector<16x1xf32>
    %229 = arith.addf %225, %228 : vector<16x1xf32>
    %230 = math.rsqrt %229 : vector<16x1xf32>
    %231 = vector.broadcast %230 : vector<16x1xf32> to vector<16x32xf32>
    %232 = arith.mulf %227, %231 : vector<16x32xf32>
    %233 = vector.broadcast %213 : vector<1x32xf32> to vector<16x32xf32>
    %234 = arith.mulf %232, %233 : vector<16x32xf32>
    %235 = vector.broadcast %214 : vector<1x32xf32> to vector<16x32xf32>
    %236 = arith.addf %234, %235 : vector<16x32xf32>
    %237 = arith.truncf %236 : vector<16x32xf32> to vector<16x32xbf16>
    %c0_77 = arith.constant 0 : index
    %c0_78 = arith.constant 0 : index
    %238 = vector.load %arg10[%c0_77, %c0_78] : memref<32x128xbf16, #tpu.memory_space<vmem>>, vector<32x128xbf16>
    %cst_79 = arith.constant dense<0.000000e+00> : vector<16x128xf32>
    %239 = tpu.matmul %237, %238, %cst_79 {dimension_numbers = #tpu.dot_dimension_numbers<[1], [0], [0], [1], [0, 0, 1, 1], [], []>} : vector<16x32xbf16>, vector<32x128xbf16>, vector<16x128xf32> -> vector<16x128xf32>
    %c0_80 = arith.constant 0 : index
    %c0_81 = arith.constant 0 : index
    %240 = vector.load %arg11[%c0_80, %c0_81] : memref<1x128xf32, #tpu.memory_space<vmem>>, vector<1x128xf32>
    %241 = vector.broadcast %240 : vector<1x128xf32> to vector<16x128xf32>
    %242 = arith.addf %239, %241 : vector<16x128xf32>
    %cst_82 = arith.constant 1.702000e+00 : f32
    %243 = vector.broadcast %cst_82 : f32 to vector<16x128xf32>
    %244 = arith.mulf %243, %242 : vector<16x128xf32>
    %245 = arith.negf %244 : vector<16x128xf32>
    %246 = math.exp %245 : vector<16x128xf32>
    %cst_83 = arith.constant 1.000000e+00 : f32
    %247 = vector.broadcast %cst_83 : f32 to vector<16x128xf32>
    %248 = arith.addf %247, %246 : vector<16x128xf32>
    %249 = arith.divf %247, %248 : vector<16x128xf32>
    %250 = arith.mulf %242, %249 : vector<16x128xf32>
    %251 = arith.truncf %250 : vector<16x128xf32> to vector<16x128xbf16>
    %c0_84 = arith.constant 0 : index
    %c0_85 = arith.constant 0 : index
    %252 = vector.load %arg12[%c0_84, %c0_85] : memref<128x32xbf16, #tpu.memory_space<vmem>>, vector<128x32xbf16>
    %cst_86 = arith.constant dense<0.000000e+00> : vector<16x32xf32>
    %253 = tpu.matmul %251, %252, %cst_86 {dimension_numbers = #tpu.dot_dimension_numbers<[1], [0], [0], [1], [0, 0, 1, 1], [], []>} : vector<16x128xbf16>, vector<128x32xbf16>, vector<16x32xf32> -> vector<16x32xf32>
    %c0_87 = arith.constant 0 : index
    %c0_88 = arith.constant 0 : index
    %254 = vector.load %arg13[%c0_87, %c0_88] : memref<1x32xf32, #tpu.memory_space<vmem>>, vector<1x32xf32>
    %255 = vector.broadcast %254 : vector<1x32xf32> to vector<16x32xf32>
    %256 = arith.addf %253, %255 : vector<16x32xf32>
    %257 = arith.addf %212, %256 : vector<16x32xf32>
    %c0_89 = arith.constant 0 : index
    %c0_90 = arith.constant 0 : index
    %c0_91 = arith.constant 0 : index
    %258 = vector.load %arg14[%c0_89, %c0_90, %c0_91] : memref<1x16x32xf32, #tpu.memory_space<vmem>>, vector<1x16x32xf32>
    %259 = vector.shape_cast %258 : vector<1x16x32xf32> to vector<16x32xf32>
    %260 = vector.shape_cast %257 : vector<16x32xf32> to vector<1x16x32xf32>
    tpu.vector_store %arg14[%c0_89, %c0_90, %c0_91], %260 {strides = array<i32>} : memref<1x16x32xf32, #tpu.memory_space<vmem>>, vector<1x16x32xf32>,
    return
  }
  func.func @transform_0(%arg0: i32) -> (i32, i32, i32) {
    %c0_i32 = arith.constant 0 : i32
    %c0_i32_0 = arith.constant 0 : i32
    %c0_i32_1 = arith.constant 0 : i32
    return %arg0, %c0_i32, %c0_i32_0 : i32, i32, i32
  }
  func.func @transform_1(%arg0: i32) -> (i32, i32) {
    %c0_i32 = arith.constant 0 : i32
    %c0_i32_0 = arith.constant 0 : i32
    %c0_i32_1 = arith.constant 0 : i32
    return %c0_i32, %c0_i32_0 : i32, i32
  }
  func.func @transform_2(%arg0: i32) -> (i32, i32) {
    %c0_i32 = arith.constant 0 : i32
    %c0_i32_0 = arith.constant 0 : i32
    %c0_i32_1 = arith.constant 0 : i32
    return %c0_i32, %c0_i32_0 : i32, i32
  }
  func.func @transform_3(%arg0: i32) -> (i32, i32) {
    %c0_i32 = arith.constant 0 : i32
    %c0_i32_0 = arith.constant 0 : i32
    %c0_i32_1 = arith.constant 0 : i32
    return %c0_i32, %c0_i32_0 : i32, i32
  }
  func.func @transform_4(%arg0: i32) -> (i32, i32) {
    %c0_i32 = arith.constant 0 : i32
    %c0_i32_0 = arith.constant 0 : i32
    %c0_i32_1 = arith.constant 0 : i32
    return %c0_i32, %c0_i32_0 : i32, i32
  }
  func.func @transform_5(%arg0: i32) -> (i32, i32) {
    %c0_i32 = arith.constant 0 : i32
    %c0_i32_0 = arith.constant 0 : i32
    %c0_i32_1 = arith.constant 0 : i32
    return %c0_i32, %c0_i32_0 : i32, i32
  }
  func.func @transform_6(%arg0: i32) -> (i32, i32) {
    %c0_i32 = arith.constant 0 : i32
    %c0_i32_0 = arith.constant 0 : i32
    %c0_i32_1 = arith.constant 0 : i32
    return %c0_i32, %c0_i32_0 : i32, i32
  }
  func.func @transform_7(%arg0: i32) -> (i32, i32) {
    %c0_i32 = arith.constant 0 : i32
    %c0_i32_0 = arith.constant 0 : i32
    %c0_i32_1 = arith.constant 0 : i32
    return %c0_i32, %c0_i32_0 : i32, i32
  }
  func.func @transform_8(%arg0: i32) -> (i32, i32) {
    %c0_i32 = arith.constant 0 : i32
    %c0_i32_0 = arith.constant 0 : i32
    %c0_i32_1 = arith.constant 0 : i32
    return %c0_i32, %c0_i32_0 : i32, i32
  }
  func.func @transform_9(%arg0: i32) -> (i32, i32) {
    %c0_i32 = arith.constant 0 : i32
    %c0_i32_0 = arith.constant 0 : i32
    %c0_i32_1 = arith.constant 0 : i32
    return %c0_i32, %c0_i32_0 : i32, i32
  }
  func.func @transform_10(%arg0: i32) -> (i32, i32) {
    %c0_i32 = arith.constant 0 : i32
    %c0_i32_0 = arith.constant 0 : i32
    %c0_i32_1 = arith.constant 0 : i32
    return %c0_i32, %c0_i32_0 : i32, i32
  }
  func.func @transform_11(%arg0: i32) -> (i32, i32) {
    %c0_i32 = arith.constant 0 : i32
    %c0_i32_0 = arith.constant 0 : i32
    %c0_i32_1 = arith.constant 0 : i32
    return %c0_i32, %c0_i32_0 : i32, i32
  }
  func.func @transform_12(%arg0: i32) -> (i32, i32) {
    %c0_i32 = arith.constant 0 : i32
    %c0_i32_0 = arith.constant 0 : i32
    %c0_i32_1 = arith.constant 0 : i32
    return %c0_i32, %c0_i32_0 : i32, i32
  }
  func.func @transform_13(%arg0: i32) -> (i32, i32, i32) {
    %c0_i32 = arith.constant 0 : i32
    %c0_i32_0 = arith.constant 0 : i32
    %c0_i32_1 = arith.constant 0 : i32
    return %arg0, %c0_i32, %c0_i32_0 : i32, i32, i32
  }
}

</mosaic_0001>

<llo_original>
// kernel: tpu_custom_call.1
$region0: #{tpu_custom_call.1}
  #allocation0 [shape = 'u32[]', space=smem, size = 0x4, offset = 0x4, fixed_abs, tag = 'smem constant byte address 0x4 - core index']
  #allocation1 [shape = 'u32[72,128]{1,0:T(1,128)}', space=vmem, size = 0x9000, scoped, tag = 'internal scratch']
  #allocation2 [shape = 'f32[16,32]{1,0:T(8,128)}', space=vmem, size = 0x2000, scoped, tag = 'scratch operand']
  %s0 = inlined_call_operand.vmem [shape: f32[2,16,32], index: 0, kind: input, shape index: {}]
  %s1 = inlined_call_operand.hbm [shape: f32[1,32], index: 1, kind: input, shape index: {}]
  %s2 = inlined_call_operand.vmem [shape: f32[1,32], index: 2, kind: input, shape index: {}]
  %s3 = inlined_call_operand.vmem [shape: bf16[32,96], index: 3, kind: input, shape index: {}]
  %s4 = inlined_call_operand.vmem [shape: f32[1,96], index: 4, kind: input, shape index: {}]
  %s5 = inlined_call_operand.vmem [shape: bf16[32,32], index: 5, kind: input, shape index: {}]
  %s6 = inlined_call_operand.vmem [shape: f32[1,32], index: 6, kind: input, shape index: {}]
  %s7 = inlined_call_operand.vmem [shape: f32[1,32], index: 7, kind: input, shape index: {}]
  %s8 = inlined_call_operand.vmem [shape: f32[1,32], index: 8, kind: input, shape index: {}]
  %s9 = inlined_call_operand.vmem [shape: bf16[32,128], index: 9, kind: input, shape index: {}]
  %s10 = inlined_call_operand.vmem [shape: f32[1,128], index: 10, kind: input, shape index: {}]
  %s11 = inlined_call_operand.vmem [shape: bf16[128,32], index: 11, kind: input, shape index: {}]
  %s12 = inlined_call_operand.vmem [shape: f32[1,32], index: 12, kind: input, shape index: {}]
  %s13 = inlined_call_operand.hbm [shape: f32[2,16,32], index: 13, kind: output, shape index: {}]
  %s14 = sld [smem:[#allocation0]]
  $region89: #{tpu_custom_call.1} parent=0
    _
  %s16 = ssub.s32 1, %s14
  %s17 = scalar_select 0, %s16, %s14
  $region1: #{tpu_custom_call.1} parent=0
    #allocation3 [shape = 'u8[512]{0}', space=vmem, size = 0x400, scoped, tag = 'input window, operand 1, single buffered']
    #allocation4 [shape = 's32[2]{0}', space=sflag, size = 0x8, scoped, tag = 'scoped memory for tpu_custom_call.1']
    #allocation5 [shape = 's32[2]{0}', space=sflag, size = 0x8, scoped, tag = 'scoped memory for tpu_custom_call.1']
    #allocation6 [shape = 'u8[16384]{0}', space=vmem, size = 0x4000, scoped, tag = 'output window, operand 0']
    %18 = vsyncpa [#allocation4], 0
    %19 = vsyncpa [#allocation5], 0
    %s20 = scalar_lea.sflag [#allocation5], 1
    %21 = vsyncpa %s20, 0
    loop: start=0, step=1, limit=4
    $region2: #{tpu_custom_call.1} parent=1 // loop_pre_header
      _
    $region3: #{tpu_custom_call.1} parent=1 // loop_header
      %s23 = sphi 0, %s27
      %p24 = scmp.ge.s32.totalorder %s23, 4
      %s33 = sphi 0, %s35
      %s36 = sphi 0, %s33
      %s37 = sphi 0, %s36
      %s53 = sphi 0, %s37
      %s57 = sphi 0, %s57
      %s59 = sphi 0, %s57
      %s60 = sphi 0, %s59
      %s74 = sphi 0, %s60
      %s78 = sphi 0, %s78
      %s80 = sphi 0, %s78
      %s81 = sphi 0, %s80
      %s95 = sphi 0, %s81
      %s99 = sphi 0, %s99
      %s101 = sphi 0, %s99
      %s102 = sphi 0, %s101
      %s116 = sphi 0, %s102
      %s120 = sphi 0, %s120
      %s122 = sphi 0, %s120
      %s123 = sphi 0, %s122
      %s137 = sphi 0, %s123
      %s141 = sphi 0, %s141
      %s143 = sphi 0, %s141
      %s144 = sphi 0, %s143
      %s158 = sphi 0, %s144
      %s162 = sphi 0, %s162
      %s164 = sphi 0, %s162
      %s165 = sphi 0, %s164
      %s179 = sphi 0, %s165
      %s183 = sphi 0, %s183
      %s185 = sphi 0, %s183
      %s186 = sphi 0, %s185
      %s200 = sphi 0, %s186
      %s204 = sphi 0, %s204
      %s206 = sphi 0, %s204
      %s207 = sphi 0, %s206
      %s221 = sphi 0, %s207
      %s225 = sphi 0, %s225
      %s227 = sphi 0, %s225
      %s228 = sphi 0, %s227
      %s242 = sphi 0, %s228
      %s246 = sphi 0, %s246
      %s248 = sphi 0, %s246
      %s249 = sphi 0, %s248
      %s263 = sphi 0, %s249
      %s267 = sphi 0, %s267
      %s269 = sphi 0, %s267
      %s270 = sphi 0, %s269
      %s284 = sphi 0, %s270
      %s288 = sphi 0, %s288
      %s290 = sphi 0, %s288
      %s291 = sphi 0, %s290
      %s305 = sphi 0, %s291
      %s311 = sphi 0, %s313
      %s314 = sphi 0, %s311
      %s315 = sphi 0, %s314
      %s331 = sphi 0, %s315
    $region4: #{tpu_custom_call.1} parent=1 // loop_header_branch
      %26 = sbr.rel (%p24) target = $region8
    $region5: #{tpu_custom_call.1} parent=1 // loop_body
      %s28 = ssub.s32 %s23, 1
      %s29 = ssub.s32 %s23, 2
      %s30 = sadd.s32 %s23, 1
      %s31 = ssub.s32 %s23, %s30
      %p32 = scmp.eq.s32.totalorder %s31, 0
      %s34 = sadd.s32 %s33, 1
      %s35 = scalar_select %p32, %s33, %s34
      %p38 = pneg %p32
      %p39 = scmp.eq.s32.totalorder %s23, 1
      %p40 = por %p38, %p39
      %p41 = scmp.ne.s32.totalorder %s33, %s36
      %p42 = scmp.eq.s32.totalorder %s23, 0
      %p43 = por %p41, %p42
      %p44 = scmp.ne.s32.totalorder %s33, %s36
      %p45 = scmp.eq.s32.totalorder %s28, 1
      %p46 = por %p44, %p45
      %p47 = scmp.ne.s32.totalorder %s36, %s37
      %p48 = scmp.eq.s32.totalorder %s28, 0
      %p49 = por %p47, %p48
      %p50 = scmp.ne.s32.totalorder %s36, %s37
      %p51 = scmp.eq.s32.totalorder %s29, 1
      %p52 = por %p50, %p51
      %p54 = scmp.ne.s32.totalorder %s37, %s53
      %p55 = scmp.eq.s32.totalorder %s29, 0
      %p56 = por %p54, %p55
      %s58 = sadd.s32 %s57, 1
      %p61 = scmp.eq.s32.totalorder %s23, 1
      %p62 = scmp.ne.s32.totalorder %s57, %s59
      %p63 = scmp.eq.s32.totalorder %s23, 0
      %p64 = por %p62, %p63
      %p65 = scmp.ne.s32.totalorder %s57, %s59
      %p66 = scmp.eq.s32.totalorder %s28, 1
      %p67 = por %p65, %p66
      %p68 = scmp.ne.s32.totalorder %s59, %s60
      %p69 = scmp.eq.s32.totalorder %s28, 0
      %p70 = por %p68, %p69
      %p71 = scmp.ne.s32.totalorder %s59, %s60
      %p72 = scmp.eq.s32.totalorder %s29, 1
      %p73 = por %p71, %p72
      %p75 = scmp.ne.s32.totalorder %s60, %s74
      %p76 = scmp.eq.s32.totalorder %s29, 0
      %p77 = por %p75, %p76
      %s79 = sadd.s32 %s78, 1
      %p82 = scmp.eq.s32.totalorder %s23, 1
      %p83 = scmp.ne.s32.totalorder %s78, %s80
      %p84 = scmp.eq.s32.totalorder %s23, 0
      %p85 = por %p83, %p84
      %p86 = scmp.ne.s32.totalorder %s78, %s80
      %p87 = scmp.eq.s32.totalorder %s28, 1
      %p88 = por %p86, %p87
      %p89 = scmp.ne.s32.totalorder %s80, %s81
      %p90 = scmp.eq.s32.totalorder %s28, 0
      %p91 = por %p89, %p90
      %p92 = scmp.ne.s32.totalorder %s80, %s81
      %p93 = scmp.eq.s32.totalorder %s29, 1
      %p94 = por %p92, %p93
      %p96 = scmp.ne.s32.totalorder %s81, %s95
      %p97 = scmp.eq.s32.totalorder %s29, 0
      %p98 = por %p96, %p97
      %s100 = sadd.s32 %s99, 1
      %p103 = scmp.eq.s32.totalorder %s23, 1
      %p104 = scmp.ne.s32.totalorder %s99, %s101
      %p105 = scmp.eq.s32.totalorder %s23, 0
      %p106 = por %p104, %p105
      %p107 = scmp.ne.s32.totalorder %s99, %s101
      %p108 = scmp.eq.s32.totalorder %s28, 1
      %p109 = por %p107, %p108
      %p110 = scmp.ne.s32.totalorder %s101, %s102
      %p111 = scmp.eq.s32.totalorder %s28, 0
      %p112 = por %p110, %p111
      %p113 = scmp.ne.s32.totalorder %s101, %s102
      %p114 = scmp.eq.s32.totalorder %s29, 1
      %p115 = por %p113, %p114
      %p117 = scmp.ne.s32.totalorder %s102, %s116
      %p118 = scmp.eq.s32.totalorder %s29, 0
      %p119 = por %p117, %p118
      %s121 = sadd.s32 %s120, 1
      %p124 = scmp.eq.s32.totalorder %s23, 1
      %p125 = scmp.ne.s32.totalorder %s120, %s122
      %p126 = scmp.eq.s32.totalorder %s23, 0
      %p127 = por %p125, %p126
      %p128 = scmp.ne.s32.totalorder %s120, %s122
      %p129 = scmp.eq.s32.totalorder %s28, 1
      %p130 = por %p128, %p129
      %p131 = scmp.ne.s32.totalorder %s122, %s123
      %p132 = scmp.eq.s32.totalorder %s28, 0
      %p133 = por %p131, %p132
      %p134 = scmp.ne.s32.totalorder %s122, %s123
      %p135 = scmp.eq.s32.totalorder %s29, 1
      %p136 = por %p134, %p135
      %p138 = scmp.ne.s32.totalorder %s123, %s137
      %p139 = scmp.eq.s32.totalorder %s29, 0
      %p140 = por %p138, %p139
      %s142 = sadd.s32 %s141, 1
      %p145 = scmp.eq.s32.totalorder %s23, 1
      %p146 = scmp.ne.s32.totalorder %s141, %s143
      %p147 = scmp.eq.s32.totalorder %s23, 0
      %p148 = por %p146, %p147
      %p149 = scmp.ne.s32.totalorder %s141, %s143
      %p150 = scmp.eq.s32.totalorder %s28, 1
      %p151 = por %p149, %p150
      %p152 = scmp.ne.s32.totalorder %s143, %s144
      %p153 = scmp.eq.s32.totalorder %s28, 0
      %p154 = por %p152, %p153
      %p155 = scmp.ne.s32.totalorder %s143, %s144
      %p156 = scmp.eq.s32.totalorder %s29, 1
      %p157 = por %p155, %p156
      %p159 = scmp.ne.s32.totalorder %s144, %s158
      %p160 = scmp.eq.s32.totalorder %s29, 0
      %p161 = por %p159, %p160
      %s163 = sadd.s32 %s162, 1
      %p166 = scmp.eq.s32.totalorder %s23, 1
      %p167 = scmp.ne.s32.totalorder %s162, %s164
      %p168 = scmp.eq.s32.totalorder %s23, 0
      %p169 = por %p167, %p168
      %p170 = scmp.ne.s32.totalorder %s162, %s164
      %p171 = scmp.eq.s32.totalorder %s28, 1
      %p172 = por %p170, %p171
      %p173 = scmp.ne.s32.totalorder %s164, %s165
      %p174 = scmp.eq.s32.totalorder %s28, 0
      %p175 = por %p173, %p174
      %p176 = scmp.ne.s32.totalorder %s164, %s165
      %p177 = scmp.eq.s32.totalorder %s29, 1
      %p178 = por %p176, %p177
      %p180 = scmp.ne.s32.totalorder %s165, %s179
      %p181 = scmp.eq.s32.totalorder %s29, 0
      %p182 = por %p180, %p181
      %s184 = sadd.s32 %s183, 1
      %p187 = scmp.eq.s32.totalorder %s23, 1
      %p188 = scmp.ne.s32.totalorder %s183, %s185
      %p189 = scmp.eq.s32.totalorder %s23, 0
      %p190 = por %p188, %p189
      %p191 = scmp.ne.s32.totalorder %s183, %s185
      %p192 = scmp.eq.s32.totalorder %s28, 1
      %p193 = por %p191, %p192
      %p194 = scmp.ne.s32.totalorder %s185, %s186
      %p195 = scmp.eq.s32.totalorder %s28, 0
      %p196 = por %p194, %p195
      %p197 = scmp.ne.s32.totalorder %s185, %s186
      %p198 = scmp.eq.s32.totalorder %s29, 1
      %p199 = por %p197, %p198
      %p201 = scmp.ne.s32.totalorder %s186, %s200
      %p202 = scmp.eq.s32.totalorder %s29, 0
      %p203 = por %p201, %p202
      %s205 = sadd.s32 %s204, 1
      %p208 = scmp.eq.s32.totalorder %s23, 1
      %p209 = scmp.ne.s32.totalorder %s204, %s206
      %p210 = scmp.eq.s32.totalorder %s23, 0
      %p211 = por %p209, %p210
      %p212 = scmp.ne.s32.totalorder %s204, %s206
      %p213 = scmp.eq.s32.totalorder %s28, 1
      %p214 = por %p212, %p213
      %p215 = scmp.ne.s32.totalorder %s206, %s207
      %p216 = scmp.eq.s32.totalorder %s28, 0
      %p217 = por %p215, %p216
      %p218 = scmp.ne.s32.totalorder %s206, %s207
      %p219 = scmp.eq.s32.totalorder %s29, 1
      %p220 = por %p218, %p219
      %p222 = scmp.ne.s32.totalorder %s207, %s221
      %p223 = scmp.eq.s32.totalorder %s29, 0
      %p224 = por %p222, %p223
      %s226 = sadd.s32 %s225, 1
      %p229 = scmp.eq.s32.totalorder %s23, 1
      %p230 = scmp.ne.s32.totalorder %s225, %s227
      %p231 = scmp.eq.s32.totalorder %s23, 0
      %p232 = por %p230, %p231
      %p233 = scmp.ne.s32.totalorder %s225, %s227
      %p234 = scmp.eq.s32.totalorder %s28, 1
      %p235 = por %p233, %p234
      %p236 = scmp.ne.s32.totalorder %s227, %s228
      %p237 = scmp.eq.s32.totalorder %s28, 0
      %p238 = por %p236, %p237
      %p239 = scmp.ne.s32.totalorder %s227, %s228
      %p240 = scmp.eq.s32.totalorder %s29, 1
      %p241 = por %p239, %p240
      %p243 = scmp.ne.s32.totalorder %s228, %s242
      %p244 = scmp.eq.s32.totalorder %s29, 0
      %p245 = por %p243, %p244
      %s247 = sadd.s32 %s246, 1
      %p250 = scmp.eq.s32.totalorder %s23, 1
      %p251 = scmp.ne.s32.totalorder %s246, %s248
      %p252 = scmp.eq.s32.totalorder %s23, 0
      %p253 = por %p251, %p252
      %p254 = scmp.ne.s32.totalorder %s246, %s248
      %p255 = scmp.eq.s32.totalorder %s28, 1
      %p256 = por %p254, %p255
      %p257 = scmp.ne.s32.totalorder %s248, %s249
      %p258 = scmp.eq.s32.totalorder %s28, 0
      %p259 = por %p257, %p258
      %p260 = scmp.ne.s32.totalorder %s248, %s249
      %p261 = scmp.eq.s32.totalorder %s29, 1
      %p262 = por %p260, %p261
      %p264 = scmp.ne.s32.totalorder %s249, %s263
      %p265 = scmp.eq.s32.totalorder %s29, 0
      %p266 = por %p264, %p265
      %s268 = sadd.s32 %s267, 1
      %p271 = scmp.eq.s32.totalorder %s23, 1
      %p272 = scmp.ne.s32.totalorder %s267, %s269
      %p273 = scmp.eq.s32.totalorder %s23, 0
      %p274 = por %p272, %p273
      %p275 = scmp.ne.s32.totalorder %s267, %s269
      %p276 = scmp.eq.s32.totalorder %s28, 1
      %p277 = por %p275, %p276
      %p278 = scmp.ne.s32.totalorder %s269, %s270
      %p279 = scmp.eq.s32.totalorder %s28, 0
      %p280 = por %p278, %p279
      %p281 = scmp.ne.s32.totalorder %s269, %s270
      %p282 = scmp.eq.s32.totalorder %s29, 1
      %p283 = por %p281, %p282
      %p285 = scmp.ne.s32.totalorder %s270, %s284
      %p286 = scmp.eq.s32.totalorder %s29, 0
      %p287 = por %p285, %p286
      %s289 = sadd.s32 %s288, 1
      %p292 = scmp.eq.s32.totalorder %s23, 1
      %p293 = scmp.ne.s32.totalorder %s288, %s290
      %p294 = scmp.eq.s32.totalorder %s23, 0
      %p295 = por %p293, %p294
      %p296 = scmp.ne.s32.totalorder %s288, %s290
      %p297 = scmp.eq.s32.totalorder %s28, 1
      %p298 = por %p296, %p297
      %p299 = scmp.ne.s32.totalorder %s290, %s291
      %p300 = scmp.eq.s32.totalorder %s28, 0
      %p301 = por %p299, %p300
      %p302 = scmp.ne.s32.totalorder %s290, %s291
      %p303 = scmp.eq.s32.totalorder %s29, 1
      %p304 = por %p302, %p303
      %p306 = scmp.ne.s32.totalorder %s291, %s305
      %p307 = scmp.eq.s32.totalorder %s29, 0
      %p308 = por %p306, %p307
      %s309 = ssub.s32 %s23, %s30
      %p310 = scmp.eq.s32.totalorder %s309, 0
      %s312 = sadd.s32 %s311, 1
      %s313 = scalar_select %p310, %s311, %s312
      %p316 = pneg %p310
      %p317 = scmp.eq.s32.totalorder %s23, 1
      %p318 = por %p316, %p317
      %p319 = scmp.ne.s32.totalorder %s311, %s314
      %p320 = scmp.eq.s32.totalorder %s23, 0
      %p321 = por %p319, %p320
      %p322 = scmp.ne.s32.totalorder %s311, %s314
      %p323 = scmp.eq.s32.totalorder %s28, 1
      %p324 = por %p322, %p323
      %p325 = scmp.ne.s32.totalorder %s314, %s315
      %p326 = scmp.eq.s32.totalorder %s28, 0
      %p327 = por %p325, %p326
      %p328 = scmp.ne.s32.totalorder %s314, %s315
      %p329 = scmp.eq.s32.totalorder %s29, 1
      %p330 = por %p328, %p329
      %p332 = scmp.ne.s32.totalorder %s315, %s331
      %p333 = scmp.eq.s32.totalorder %s29, 0
      %p334 = por %p332, %p333
      %p335 = scmp.le.s32.totalorder 1, %s23
      %p336 = scmp.lt.s32.totalorder %s23, 3
      %p337 = pnand %p335, %p336
      %p338 = pneg %p337
      // Predicated region
      $region9: #{tpu_custom_call.1} parent=5 // pred_check
        _
      $region10: #{tpu_custom_call.1} parent=5 // pred_check_branch
        %340 = sbr.rel (%p337) target = $region12
      $region11: #{tpu_custom_call.1} parent=5 // pred_region
        %s341 = ssub.s32 %s23, 1
        // Predicated region
        $region13: #{tpu_custom_call.1} parent=11 // pred_check
          %p342 = pneg %p70
        $region14: #{tpu_custom_call.1} parent=11 // pred_check_branch
          %344 = sbr.rel (%p342) target = $region16
        $region15: #{tpu_custom_call.1} parent=11 // pred_region
          %346 = vsyncadd [#allocation4], 0
          %s348 = sshll.u32 %s1, 4
          %s349 = int_to_ptr.hbm [resolvable:$true] %s348
          %s350 = sshll.u32 [#allocation3], 4
          %s351 = int_to_ptr.vmem [resolvable:$true] %s350
          %353 = dma.hbm_to_vmem [thread:$0]  %s349, 16, %s351, [#allocation4]
        $region16: #{tpu_custom_call.1} parent=11 // pred_fallthru
          _
        // Predicated region
        $region17: #{tpu_custom_call.1} parent=11 // pred_check
          %p354 = pneg %p91
        $region18: #{tpu_custom_call.1} parent=11 // pred_check_branch
          %356 = sbr.rel (%p354) target = $region20
        $region19: #{tpu_custom_call.1} parent=11 // pred_region
          _
        $region20: #{tpu_custom_call.1} parent=11 // pred_fallthru
          _
        // Predicated region
        $region21: #{tpu_custom_call.1} parent=11 // pred_check
          %p357 = pneg %p112
        $region22: #{tpu_custom_call.1} parent=11 // pred_check_branch
          %359 = sbr.rel (%p357) target = $region24
        $region23: #{tpu_custom_call.1} parent=11 // pred_region
          _
        $region24: #{tpu_custom_call.1} parent=11 // pred_fallthru
          _
        // Predicated region
        $region25: #{tpu_custom_call.1} parent=11 // pred_check
          %p360 = pneg %p133
        $region26: #{tpu_custom_call.1} parent=11 // pred_check_branch
          %362 = sbr.rel (%p360) target = $region28
        $region27: #{tpu_custom_call.1} parent=11 // pred_region
          _
        $region28: #{tpu_custom_call.1} parent=11 // pred_fallthru
          _
        // Predicated region
        $region29: #{tpu_custom_call.1} parent=11 // pred_check
          %p363 = pneg %p154
        $region30: #{tpu_custom_call.1} parent=11 // pred_check_branch
          %365 = sbr.rel (%p363) target = $region32
        $region31: #{tpu_custom_call.1} parent=11 // pred_region
          _
        $region32: #{tpu_custom_call.1} parent=11 // pred_fallthru
          _
        // Predicated region
        $region33: #{tpu_custom_call.1} parent=11 // pred_check
          %p366 = pneg %p175
        $region34: #{tpu_custom_call.1} parent=11 // pred_check_branch
          %368 = sbr.rel (%p366) target = $region36
        $region35: #{tpu_custom_call.1} parent=11 // pred_region
          _
        $region36: #{tpu_custom_call.1} parent=11 // pred_fallthru
          _
        // Predicated region
        $region37: #{tpu_custom_call.1} parent=11 // pred_check
          %p369 = pneg %p196
        $region38: #{tpu_custom_call.1} parent=11 // pred_check_branch
          %371 = sbr.rel (%p369) target = $region40
        $region39: #{tpu_custom_call.1} parent=11 // pred_region
          _
        $region40: #{tpu_custom_call.1} parent=11 // pred_fallthru
          _
        // Predicated region
        $region41: #{tpu_custom_call.1} parent=11 // pred_check
          %p372 = pneg %p217
        $region42: #{tpu_custom_call.1} parent=11 // pred_check_branch
          %374 = sbr.rel (%p372) target = $region44
        $region43: #{tpu_custom_call.1} parent=11 // pred_region
          _
        $region44: #{tpu_custom_call.1} parent=11 // pred_fallthru
          _
        // Predicated region
        $region45: #{tpu_custom_call.1} parent=11 // pred_check
          %p375 = pneg %p238
        $region46: #{tpu_custom_call.1} parent=11 // pred_check_branch
          %377 = sbr.rel (%p375) target = $region48
        $region47: #{tpu_custom_call.1} parent=11 // pred_region
          _
        $region48: #{tpu_custom_call.1} parent=11 // pred_fallthru
          _
        // Predicated region
        $region49: #{tpu_custom_call.1} parent=11 // pred_check
          %p378 = pneg %p259
        $region50: #{tpu_custom_call.1} parent=11 // pred_check_branch
          %380 = sbr.rel (%p378) target = $region52
        $region51: #{tpu_custom_call.1} parent=11 // pred_region
          _
        $region52: #{tpu_custom_call.1} parent=11 // pred_fallthru
          _
        // Predicated region
        $region53: #{tpu_custom_call.1} parent=11 // pred_check
          %p381 = pneg %p280
        $region54: #{tpu_custom_call.1} parent=11 // pred_check_branch
          %383 = sbr.rel (%p381) target = $region56
        $region55: #{tpu_custom_call.1} parent=11 // pred_region
          _
        $region56: #{tpu_custom_call.1} parent=11 // pred_fallthru
          _
        // Predicated region
        $region57: #{tpu_custom_call.1} parent=11 // pred_check
          %p384 = pneg %p301
        $region58: #{tpu_custom_call.1} parent=11 // pred_check_branch
          %386 = sbr.rel (%p384) target = $region60
        $region59: #{tpu_custom_call.1} parent=11 // pred_region
          _
        $region60: #{tpu_custom_call.1} parent=11 // pred_fallthru
          _
      $region12: #{tpu_custom_call.1} parent=5 // pred_fallthru
        _
      %p387 = scmp.lt.s32.totalorder %s23, 2
      // Predicated region
      $region61: #{tpu_custom_call.1} parent=5 // pred_check
        %p388 = pneg %p387
      $region62: #{tpu_custom_call.1} parent=5 // pred_check_branch
        %390 = sbr.rel (%p388) target = $region64
      $region63: #{tpu_custom_call.1} parent=5 // pred_region
        // Predicated region
        $region65: #{tpu_custom_call.1} parent=63 // pred_check
          %p391 = pneg %p43
        $region66: #{tpu_custom_call.1} parent=63 // pred_check_branch
          %393 = sbr.rel (%p391) target = $region68
        $region67: #{tpu_custom_call.1} parent=63 // pred_region
          %p394 = scmp.lt.s32.totalorder %s23, 1
          %s395 = scalar_select %p394, %s23, 1
          %s396 = smul.addr %s395, 2
          %s397 = smul.addr %s396, 8
          %s398 = scalar_lea.vmem %s0, %s397
        $region68: #{tpu_custom_call.1} parent=63 // pred_fallthru
          _
      $region64: #{tpu_custom_call.1} parent=5 // pred_fallthru
        _
      %p399 = scmp.le.s32.totalorder 1, %s23
      %p400 = scmp.lt.s32.totalorder %s23, 3
      %p401 = pnand %p399, %p400
      %p402 = pneg %p401
      // Predicated region
      $region69: #{tpu_custom_call.1} parent=5 // pred_check
        _
      $region70: #{tpu_custom_call.1} parent=5 // pred_check_branch
        %404 = sbr.rel (%p401) target = $region72
      $region71: #{tpu_custom_call.1} parent=5 // pred_region
        %s405 = ssub.s32 %s23, 1
        // Predicated region
        $region73: #{tpu_custom_call.1} parent=71 // pred_check
          %p406 = pneg %p70
        $region74: #{tpu_custom_call.1} parent=71 // pred_check_branch
          %408 = sbr.rel (%p406) target = $region76
        $region75: #{tpu_custom_call.1} parent=71 // pred_region
          %410 = dma.done [#allocation4], 16
        $region76: #{tpu_custom_call.1} parent=71 // pred_fallthru
          _
        %p411 = scmp.lt.s32.totalorder %s28, 1
        %s412 = scalar_select %p411, %s28, 1
        %s413 = smul.addr %s412, 2
        %s414 = smul.addr %s413, 8
        %s415 = scalar_lea.vmem %s0, %s414
        %p416 = pneg %p49
        %p417 = pneg %p46
        %p418 = pneg %p70
        %p419 = pneg %p67
        %p420 = pneg %p91
        %p421 = pneg %p88
        %p422 = pneg %p112
        %p423 = pneg %p109
        %p424 = pneg %p133
        %p425 = pneg %p130
        %p426 = pneg %p154
        %p427 = pneg %p151
        %p428 = pneg %p175
        %p429 = pneg %p172
        %p430 = pneg %p196
        %p431 = pneg %p193
        %p432 = pneg %p217
        %p433 = pneg %p214
        %p434 = pneg %p238
        %p435 = pneg %p235
        %p436 = pneg %p259
        %p437 = pneg %p256
        %p438 = pneg %p280
        %p439 = pneg %p277
        %p440 = pneg %p301
        %p441 = pneg %p298
        %p442 = pneg %p327
        %p443 = pneg %p324
        %s444 = sand.u32 %s314, 1
        %s445 = scalar_lea.sflag [#allocation5], %s444
        %s446 = sand.u32 %s314, 1
        %s447 = smul.addr %s446, 16
        %s448 = scalar_lea.vmem [#allocation6], %s447
        %p449 = scmp.lt.s32.totalorder %s28, 1
        %s450 = scalar_select %p449, %s28, 1
        %s451 = smul.addr %s450, 2
        %s452 = smul.addr %s451, 8
        %s453 = scalar_lea.vmem %s0, %s452
        %v455 = vld [vmem:[%s453] sm:$0xff]
        %v456 = vld [vmem:[%s453 + $0x8] sm:$0xff]
        %v457 = vld [vmem:[#allocation3] sm:$0x1]
        %v458 = vld [vmem:[%s2] sm:$0x1]
        %vm459 = vcmask 261120
        %v460 = vsel %vm459, %v455, 0.0
        %461 = vadd.xlane.f32.xlu0 %v460
        %v462 = vpop.xlane.xlu0 %461
        %v463 = vsel %vm459, %v456, 0.0
        %464 = vadd.xlane.f32.xlu0 %v463
        %v465 = vpop.xlane.xlu0 %464
        %v466 = vrcp.pop 32.0
        %v467 = vmul.f32 32.0, %v466
        %v468 = vsub.f32 1.0, %v467
        %v469 = vmul.f32 %v466, %v468
        %v470 = vadd.f32 %v466, %v469
        %vm471 = vweird.f32 %v466
        %v472 = vsel %vm471, %v466, %v470
        %v473 = vmul.f32 %v462, %v472
        %v474 = vmul.f32 %v465, %v472
        %v475 = vsub.f32 %v455, %v473
        %v476 = vsub.f32 %v456, %v474
        %v477 = vmul.f32 %v475, %v475
        %v478 = vmul.f32 %v476, %v476
        %v479 = vsel %vm459, %v477, 0.0
        %480 = vadd.xlane.f32.xlu0 %v479
        %v481 = vpop.xlane.xlu0 %480
        %v482 = vsel %vm459, %v478, 0.0
        %483 = vadd.xlane.f32.xlu0 %v482
        %v484 = vpop.xlane.xlu0 %483
        %v485 = vmul.f32 %v481, %v472
        %v486 = vmul.f32 %v484, %v472
        %v487 = vadd.f32 %v485, 1e-05
        %v488 = vadd.f32 %v486, 1e-05
        %v489 = vrsqrt.pop %v487
        %v490 = vmul.f32 %v489, %v487
        %v491 = vmul.f32 %v490, %v489
        %v492 = vmul.f32 0.5, %v491
        %v493 = vsub.f32 1.5, %v492
        %v494 = vmul.f32 %v489, %v493
        %vm495 = vweird.f32 %v487
        %vm496 = vweird.f32 %v489
        %vm497 = vmor %vm495, %vm496
        %v498 = vsel %vm497, %v489, %v494
        %v499 = vrsqrt.pop %v488
        %v500 = vmul.f32 %v499, %v488
        %v501 = vmul.f32 %v500, %v499
        %v502 = vmul.f32 0.5, %v501
        %v503 = vsub.f32 1.5, %v502
        %v504 = vmul.f32 %v499, %v503
        %vm505 = vweird.f32 %v488
        %vm506 = vweird.f32 %v499
        %vm507 = vmor %vm505, %vm506
        %v508 = vsel %vm507, %v499, %v504
        %v509 = vmul.f32 %v475, %v498
        %v510 = vmul.f32 %v476, %v508
        %v512 = vperm.slane %v457, 0
        %v514 = vmul.f32 %v509, %v512
        %v515 = vmul.f32 %v510, %v512
        %v517 = vperm.slane %v458, 0
        %v519 = vadd.f32 %v514, %v517
        %v520 = vadd.f32 %v515, %v517
        %v521 = vpack.c.bf16 %v520, %v519
        %v522 = vld [vmem:[%s3] sm:$0xf]
        %v523 = vld [vmem:[%s3 + $0x4] sm:$0xf]
        %v524 = vld [vmem:[%s3 + $0x8] sm:$0xf]
        %v525 = vld [vmem:[%s3 + $0xc] sm:$0xf]
        %v526 = vld [vmem:[%s4] sm:$0x1]
        %v528 = vperm.slane %v526, 0
        %v534 = vunpack.c.l.b16 %v522
        %v535 = vunpack.c.l.b16 %v523
        %v536 = vunpack.c.l.b16 %v524
        %v537 = vunpack.c.l.b16 %v525
        %v538 = vpack.c.b16 %v535, %v534
        %v539 = vpack.c.b16 %v537, %v536
        %v543 = vsel %vm459, %v521, 0
        %545 = vmatpush.bf16.msra.mxu0 0
        %546 = vmatpush.bf16.msra.mxu0 0
        %547 = vmatpush.bf16.msra.mxu0 0
        %548 = vmatpush.bf16.msra.mxu0 0
        %549 = vmatpush.bf16.msra.mxu0 0
        %550 = vmatpush.bf16.msra.mxu0 0
        %551 = vmatpush.bf16.msra.mxu0 %v539
        %552 = vmatpush.bf16.msra.mxu0 %v538
        %553 = vmatmul.bf16.gmra.mxu0 %v543
        %v554 = vpop.f32.mrf.mxu0
        %v555 = vadd.f32 %v528, %v554
        %v556 = vpop.f32.mrf.mxu0
        %v557 = vadd.f32 %v528, %v556
        %558 = vdwg.mxu0
        %v559 = vmul.f32 %v555, 0.35355338
        %v560 = vmul.f32 %v557, 0.35355338
        %v561 = vpack.c.bf16 %v559, %v559
        %v562 = vpack.c.bf16 %v555, %v555
        %564 = vrot.lane.b32.xlu0 %v562, 96
        %v565 = vpop.permute.xlu0 %564
        %vm566 = vcmask 64512
        %v568 = vsel %vm566, %v561, 0
        %v571 = vsel %vm566, %v565, 0
        %573 = vmatpush.bf16.xpose.msra.mxu0 0
        %574 = vmatpush.bf16.xpose.msra.mxu0 0
        %575 = vmatpush.bf16.xpose.msra.mxu0 0
        %576 = vmatpush.bf16.xpose.msra.mxu0 0
        %577 = vmatpush.bf16.xpose.msra.mxu0 0
        %578 = vmatpush.bf16.xpose.msra.mxu0 0
        %579 = vmatpush.bf16.xpose.msra.mxu0 0
        %580 = vmatpush.bf16.xpose.msra.mxu0 %v571
        %581 = vmatmul.bf16.gmra.mxu0 %v568
        %v582 = vpop.f32.mrf.mxu0
        %v583 = vadd.f32 0.0, %v582
        %v584 = vpop.f32.mrf.mxu0
        %585 = vdwg.mxu0
        %v586 = vsel %vm566, %v583, -inf
        %587 = vmax.xlane.f32.xlu0 %v586
        %v588 = vpop.xlane.xlu0 %587
        %v589 = vsub.f32 %v583, %v588
        %v590 = vmul.f32 %v589, 1.442695
        %v591 = vpow.pop %v590
        %v592 = vsel %vm566, %v591, 0.0
        %593 = vadd.xlane.f32.xlu0 %v592
        %v594 = vpop.xlane.xlu0 %593
        %v595 = vrcp.pop %v594
        %v596 = vmul.f32 %v591, %v595
        %v597 = vpack.c.bf16 %v596, %v596
        %598 = vrot.lane.b32.xlu0 %v562, 64
        %v599 = vpop.permute.xlu0 %598
        %v601 = vsel %vm566, %v597, 0
        %vm603 = vcmask 1043456
        %v605 = vsel %vm603, %v599, 0
        %607 = vmatpush.bf16.msra.mxu0 0
        %608 = vmatpush.bf16.msra.mxu0 0
        %609 = vmatpush.bf16.msra.mxu0 0
        %610 = vmatpush.bf16.msra.mxu0 0
        %611 = vmatpush.bf16.msra.mxu0 0
        %612 = vmatpush.bf16.msra.mxu0 0
        %613 = vmatpush.bf16.msra.mxu0 0
        %614 = vmatpush.bf16.msra.mxu0 %v605
        %615 = vmatmul.bf16.gmra.mxu0 %v601
        %v616 = vpop.f32.mrf.mxu0
        %v617 = vadd.f32 0.0, %v616
        %v618 = vpop.f32.mrf.mxu0
        %619 = vdwg.mxu0
        %620 = vst.msk [vmem:[#allocation2] sm:$0xff] %vm566, %v617
        %622 = vrot.lane.b32.xlu0 %v561, 120
        %v623 = vpop.permute.xlu0 %622
        %624 = vrot.lane.b32.xlu0 %v562, 88
        %v625 = vpop.permute.xlu0 %624
        %v627 = vsel %vm566, %v623, 0
        %v630 = vsel %vm566, %v625, 0
        %632 = vmatpush.bf16.xpose.msra.mxu0 0
        %633 = vmatpush.bf16.xpose.msra.mxu0 0
        %634 = vmatpush.bf16.xpose.msra.mxu0 0
        %635 = vmatpush.bf16.xpose.msra.mxu0 0
        %636 = vmatpush.bf16.xpose.msra.mxu0 0
        %637 = vmatpush.bf16.xpose.msra.mxu0 0
        %638 = vmatpush.bf16.xpose.msra.mxu0 0
        %639 = vmatpush.bf16.xpose.msra.mxu0 %v630
        %640 = vmatmul.bf16.gmra.mxu0 %v627
        %v641 = vpop.f32.mrf.mxu0
        %v642 = vadd.f32 0.0, %v641
        %v643 = vpop.f32.mrf.mxu0
        %644 = vdwg.mxu0
        %v645 = vsel %vm566, %v642, -inf
        %646 = vmax.xlane.f32.xlu0 %v645
        %v647 = vpop.xlane.xlu0 %646
        %v648 = vsub.f32 %v642, %v647
        %v649 = vmul.f32 %v648, 1.442695
        %v650 = vpow.pop %v649
        %v651 = vsel %vm566, %v650, 0.0
        %652 = vadd.xlane.f32.xlu0 %v651
        %v653 = vpop.xlane.xlu0 %652
        %v654 = vrcp.pop %v653
        %v655 = vmul.f32 %v650, %v654
        %v656 = vpack.c.bf16 %v655, %v655
        %657 = vrot.lane.b32.xlu0 %v562, 56
        %v658 = vpop.permute.xlu0 %657
        %v660 = vsel %vm566, %v656, 0
        %v663 = vsel %vm603, %v658, 0
        %665 = vmatpush.bf16.msra.mxu0 0
        %666 = vmatpush.bf16.msra.mxu0 0
        %667 = vmatpush.bf16.msra.mxu0 0
        %668 = vmatpush.bf16.msra.mxu0 0
        %669 = vmatpush.bf16.msra.mxu0 0
        %670 = vmatpush.bf16.msra.mxu0 0
        %671 = vmatpush.bf16.msra.mxu0 0
        %672 = vmatpush.bf16.msra.mxu0 %v663
        %673 = vmatmul.bf16.gmra.mxu0 %v660
        %v674 = vpop.f32.mrf.mxu0
        %v675 = vadd.f32 0.0, %v674
        %v676 = vpop.f32.mrf.mxu0
        %677 = vdwg.mxu0
        %679 = vrot.lane.b32.xlu0 %v675, 8
        %v680 = vpop.permute.xlu0 %679
        %vm682 = vcmask 130112
        %683 = vst.msk [vmem:[#allocation2] sm:$0xff] %vm682, %v680
        %684 = vrot.lane.b32.xlu0 %v561, 112
        %v685 = vpop.permute.xlu0 %684
        %686 = vrot.lane.b32.xlu0 %v562, 80
        %v687 = vpop.permute.xlu0 %686
        %v689 = vsel %vm566, %v685, 0
        %v692 = vsel %vm566, %v687, 0
        %694 = vmatpush.bf16.xpose.msra.mxu0 0
        %695 = vmatpush.bf16.xpose.msra.mxu0 0
        %696 = vmatpush.bf16.xpose.msra.mxu0 0
        %697 = vmatpush.bf16.xpose.msra.mxu0 0
        %698 = vmatpush.bf16.xpose.msra.mxu0 0
        %699 = vmatpush.bf16.xpose.msra.mxu0 0
        %700 = vmatpush.bf16.xpose.msra.mxu0 0
        %701 = vmatpush.bf16.xpose.msra.mxu0 %v692
        %702 = vmatmul.bf16.gmra.mxu0 %v689
        %v703 = vpop.f32.mrf.mxu0
        %v704 = vadd.f32 0.0, %v703
        %v705 = vpop.f32.mrf.mxu0
        %706 = vdwg.mxu0
        %v707 = vsel %vm566, %v704, -inf
        %708 = vmax.xlane.f32.xlu0 %v707
        %v709 = vpop.xlane.xlu0 %708
        %v710 = vsub.f32 %v704, %v709
        %v711 = vmul.f32 %v710, 1.442695
        %v712 = vpow.pop %v711
        %v713 = vsel %vm566, %v712, 0.0
        %714 = vadd.xlane.f32.xlu0 %v713
        %v715 = vpop.xlane.xlu0 %714
        %v716 = vrcp.pop %v715
        %v717 = vmul.f32 %v712, %v716
        %v718 = vpack.c.bf16 %v717, %v717
        %719 = vrot.lane.b32.xlu0 %v562, 48
        %v720 = vpop.permute.xlu0 %719
        %v722 = vsel %vm566, %v718, 0
        %v725 = vsel %vm603, %v720, 0
        %727 = vmatpush.bf16.msra.mxu0 0
        %728 = vmatpush.bf16.msra.mxu0 0
        %729 = vmatpush.bf16.msra.mxu0 0
        %730 = vmatpush.bf16.msra.mxu0 0
        %731 = vmatpush.bf16.msra.mxu0 0
        %732 = vmatpush.bf16.msra.mxu0 0
        %733 = vmatpush.bf16.msra.mxu0 0
        %734 = vmatpush.bf16.msra.mxu0 %v725
        %735 = vmatmul.bf16.gmra.mxu0 %v722
        %v736 = vpop.f32.mrf.mxu0
        %v737 = vadd.f32 0.0, %v736
        %v738 = vpop.f32.mrf.mxu0
        %739 = vdwg.mxu0
        %741 = vrot.lane.b32.xlu0 %v737, 16
        %v742 = vpop.permute.xlu0 %741
        %vm744 = vcmask 195712
        %745 = vst.msk [vmem:[#allocation2] sm:$0xff] %vm744, %v742
        %746 = vrot.lane.b32.xlu0 %v561, 104
        %v747 = vpop.permute.xlu0 %746
        %748 = vrot.lane.b32.xlu0 %v562, 72
        %v749 = vpop.permute.xlu0 %748
        %v751 = vsel %vm566, %v747, 0
        %v754 = vsel %vm566, %v749, 0
        %756 = vmatpush.bf16.xpose.msra.mxu0 0
        %757 = vmatpush.bf16.xpose.msra.mxu0 0
        %758 = vmatpush.bf16.xpose.msra.mxu0 0
        %759 = vmatpush.bf16.xpose.msra.mxu0 0
        %760 = vmatpush.bf16.xpose.msra.mxu0 0
        %761 = vmatpush.bf16.xpose.msra.mxu0 0
        %762 = vmatpush.bf16.xpose.msra.mxu0 0
        %763 = vmatpush.bf16.xpose.msra.mxu0 %v754
        %764 = vmatmul.bf16.gmra.mxu0 %v751
        %v765 = vpop.f32.mrf.mxu0
        %v766 = vadd.f32 0.0, %v765
        %v767 = vpop.f32.mrf.mxu0
        %768 = vdwg.mxu0
        %v769 = vsel %vm566, %v766, -inf
        %770 = vmax.xlane.f32.xlu0 %v769
        %v771 = vpop.xlane.xlu0 %770
        %v772 = vsub.f32 %v766, %v771
        %v773 = vmul.f32 %v772, 1.442695
        %v774 = vpow.pop %v773
        %v775 = vsel %vm566, %v774, 0.0
        %776 = vadd.xlane.f32.xlu0 %v775
        %v777 = vpop.xlane.xlu0 %776
        %v778 = vrcp.pop %v777
        %v779 = vmul.f32 %v774, %v778
        %v780 = vpack.c.bf16 %v779, %v779
        %781 = vrot.lane.b32.xlu0 %v562, 40
        %v782 = vpop.permute.xlu0 %781
        %v784 = vsel %vm566, %v780, 0
        %v787 = vsel %vm603, %v782, 0
        %789 = vmatpush.bf16.msra.mxu0 0
        %790 = vmatpush.bf16.msra.mxu0 0
        %791 = vmatpush.bf16.msra.mxu0 0
        %792 = vmatpush.bf16.msra.mxu0 0
        %793 = vmatpush.bf16.msra.mxu0 0
        %794 = vmatpush.bf16.msra.mxu0 0
        %795 = vmatpush.bf16.msra.mxu0 0
        %796 = vmatpush.bf16.msra.mxu0 %v787
        %797 = vmatmul.bf16.gmra.mxu0 %v784
        %v798 = vpop.f32.mrf.mxu0
        %v799 = vadd.f32 0.0, %v798
        %v800 = vpop.f32.mrf.mxu0
        %801 = vdwg.mxu0
        %803 = vrot.lane.b32.xlu0 %v799, 24
        %v804 = vpop.permute.xlu0 %803
        %vm806 = vcmask 261312
        %807 = vst.msk [vmem:[#allocation2] sm:$0xff] %vm806, %v804
        %v808 = vpack.c.bf16 %v560, %v560
        %v809 = vpack.c.bf16 %v557, %v557
        %811 = vrot.lane.b32.xlu0 %v809, 96
        %v812 = vpop.permute.xlu0 %811
        %v814 = vsel %vm566, %v808, 0
        %v817 = vsel %vm566, %v812, 0
        %819 = vmatpush.bf16.xpose.msra.mxu0 0
        %820 = vmatpush.bf16.xpose.msra.mxu0 0
        %821 = vmatpush.bf16.xpose.msra.mxu0 0
        %822 = vmatpush.bf16.xpose.msra.mxu0 0
        %823 = vmatpush.bf16.xpose.msra.mxu0 0
        %824 = vmatpush.bf16.xpose.msra.mxu0 0
        %825 = vmatpush.bf16.xpose.msra.mxu0 0
        %826 = vmatpush.bf16.xpose.msra.mxu0 %v817
        %827 = vmatmul.bf16.gmra.mxu0 %v814
        %v828 = vpop.f32.mrf.mxu0
        %v829 = vadd.f32 0.0, %v828
        %v830 = vpop.f32.mrf.mxu0
        %831 = vdwg.mxu0
        %v832 = vsel %vm566, %v829, -inf
        %833 = vmax.xlane.f32.xlu0 %v832
        %v834 = vpop.xlane.xlu0 %833
        %v835 = vsub.f32 %v829, %v834
        %v836 = vmul.f32 %v835, 1.442695
        %v837 = vpow.pop %v836
        %v838 = vsel %vm566, %v837, 0.0
        %839 = vadd.xlane.f32.xlu0 %v838
        %v840 = vpop.xlane.xlu0 %839
        %v841 = vrcp.pop %v840
        %v842 = vmul.f32 %v837, %v841
        %v843 = vpack.c.bf16 %v842, %v842
        %844 = vrot.lane.b32.xlu0 %v809, 64
        %v845 = vpop.permute.xlu0 %844
        %v847 = vsel %vm566, %v843, 0
        %v850 = vsel %vm603, %v845, 0
        %852 = vmatpush.bf16.msra.mxu0 0
        %853 = vmatpush.bf16.msra.mxu0 0
        %854 = vmatpush.bf16.msra.mxu0 0
        %855 = vmatpush.bf16.msra.mxu0 0
        %856 = vmatpush.bf16.msra.mxu0 0
        %857 = vmatpush.bf16.msra.mxu0 0
        %858 = vmatpush.bf16.msra.mxu0 0
        %859 = vmatpush.bf16.msra.mxu0 %v850
        %860 = vmatmul.bf16.gmra.mxu0 %v847
        %v861 = vpop.f32.mrf.mxu0
        %v862 = vadd.f32 0.0, %v861
        %v863 = vpop.f32.mrf.mxu0
        %864 = vdwg.mxu0
        %865 = vst.msk [vmem:[#allocation2 + $0x8] sm:$0xff] %vm566, %v862
        %867 = vrot.lane.b32.xlu0 %v808, 120
        %v868 = vpop.permute.xlu0 %867
        %869 = vrot.lane.b32.xlu0 %v809, 88
        %v870 = vpop.permute.xlu0 %869
        %v872 = vsel %vm566, %v868, 0
        %v875 = vsel %vm566, %v870, 0
        %877 = vmatpush.bf16.xpose.msra.mxu0 0
        %878 = vmatpush.bf16.xpose.msra.mxu0 0
        %879 = vmatpush.bf16.xpose.msra.mxu0 0
        %880 = vmatpush.bf16.xpose.msra.mxu0 0
        %881 = vmatpush.bf16.xpose.msra.mxu0 0
        %882 = vmatpush.bf16.xpose.msra.mxu0 0
        %883 = vmatpush.bf16.xpose.msra.mxu0 0
        %884 = vmatpush.bf16.xpose.msra.mxu0 %v875
        %885 = vmatmul.bf16.gmra.mxu0 %v872
        %v886 = vpop.f32.mrf.mxu0
        %v887 = vadd.f32 0.0, %v886
        %v888 = vpop.f32.mrf.mxu0
        %889 = vdwg.mxu0
        %v890 = vsel %vm566, %v887, -inf
        %891 = vmax.xlane.f32.xlu0 %v890
        %v892 = vpop.xlane.xlu0 %891
        %v893 = vsub.f32 %v887, %v892
        %v894 = vmul.f32 %v893, 1.442695
        %v895 = vpow.pop %v894
        %v896 = vsel %vm566, %v895, 0.0
        %897 = vadd.xlane.f32.xlu0 %v896
        %v898 = vpop.xlane.xlu0 %897
        %v899 = vrcp.pop %v898
        %v900 = vmul.f32 %v895, %v899
        %v901 = vpack.c.bf16 %v900, %v900
        %902 = vrot.lane.b32.xlu0 %v809, 56
        %v903 = vpop.permute.xlu0 %902
        %v905 = vsel %vm566, %v901, 0
        %v908 = vsel %vm603, %v903, 0
        %910 = vmatpush.bf16.msra.mxu0 0
        %911 = vmatpush.bf16.msra.mxu0 0
        %912 = vmatpush.bf16.msra.mxu0 0
        %913 = vmatpush.bf16.msra.mxu0 0
        %914 = vmatpush.bf16.msra.mxu0 0
        %915 = vmatpush.bf16.msra.mxu0 0
        %916 = vmatpush.bf16.msra.mxu0 0
        %917 = vmatpush.bf16.msra.mxu0 %v908
        %918 = vmatmul.bf16.gmra.mxu0 %v905
        %v919 = vpop.f32.mrf.mxu0
        %v920 = vadd.f32 0.0, %v919
        %v921 = vpop.f32.mrf.mxu0
        %922 = vdwg.mxu0
        %924 = vrot.lane.b32.xlu0 %v920, 8
        %v925 = vpop.permute.xlu0 %924
        %927 = vst.msk [vmem:[#allocation2 + $0x8] sm:$0xff] %vm682, %v925
        %928 = vrot.lane.b32.xlu0 %v808, 112
        %v929 = vpop.permute.xlu0 %928
        %930 = vrot.lane.b32.xlu0 %v809, 80
        %v931 = vpop.permute.xlu0 %930
        %v933 = vsel %vm566, %v929, 0
        %v936 = vsel %vm566, %v931, 0
        %938 = vmatpush.bf16.xpose.msra.mxu0 0
        %939 = vmatpush.bf16.xpose.msra.mxu0 0
        %940 = vmatpush.bf16.xpose.msra.mxu0 0
        %941 = vmatpush.bf16.xpose.msra.mxu0 0
        %942 = vmatpush.bf16.xpose.msra.mxu0 0
        %943 = vmatpush.bf16.xpose.msra.mxu0 0
        %944 = vmatpush.bf16.xpose.msra.mxu0 0
        %945 = vmatpush.bf16.xpose.msra.mxu0 %v936
        %946 = vmatmul.bf16.gmra.mxu0 %v933
        %v947 = vpop.f32.mrf.mxu0
        %v948 = vadd.f32 0.0, %v947
        %v949 = vpop.f32.mrf.mxu0
        %950 = vdwg.mxu0
        %v951 = vsel %vm566, %v948, -inf
        %952 = vmax.xlane.f32.xlu0 %v951
        %v953 = vpop.xlane.xlu0 %952
        %v954 = vsub.f32 %v948, %v953
        %v955 = vmul.f32 %v954, 1.442695
        %v956 = vpow.pop %v955
        %v957 = vsel %vm566, %v956, 0.0
        %958 = vadd.xlane.f32.xlu0 %v957
        %v959 = vpop.xlane.xlu0 %958
        %v960 = vrcp.pop %v959
        %v961 = vmul.f32 %v956, %v960
        %v962 = vpack.c.bf16 %v961, %v961
        %963 = vrot.lane.b32.xlu0 %v809, 48
        %v964 = vpop.permute.xlu0 %963
        %v966 = vsel %vm566, %v962, 0
        %v969 = vsel %vm603, %v964, 0
        %971 = vmatpush.bf16.msra.mxu0 0
        %972 = vmatpush.bf16.msra.mxu0 0
        %973 = vmatpush.bf16.msra.mxu0 0
        %974 = vmatpush.bf16.msra.mxu0 0
        %975 = vmatpush.bf16.msra.mxu0 0
        %976 = vmatpush.bf16.msra.mxu0 0
        %977 = vmatpush.bf16.msra.mxu0 0
        %978 = vmatpush.bf16.msra.mxu0 %v969
        %979 = vmatmul.bf16.gmra.mxu0 %v966
        %v980 = vpop.f32.mrf.mxu0
        %v981 = vadd.f32 0.0, %v980
        %v982 = vpop.f32.mrf.mxu0
        %983 = vdwg.mxu0
        %985 = vrot.lane.b32.xlu0 %v981, 16
        %v986 = vpop.permute.xlu0 %985
        %988 = vst.msk [vmem:[#allocation2 + $0x8] sm:$0xff] %vm744, %v986
        %989 = vrot.lane.b32.xlu0 %v808, 104
        %v990 = vpop.permute.xlu0 %989
        %991 = vrot.lane.b32.xlu0 %v809, 72
        %v992 = vpop.permute.xlu0 %991
        %v994 = vsel %vm566, %v990, 0
        %v997 = vsel %vm566, %v992, 0
        %999 = vmatpush.bf16.xpose.msra.mxu0 0
        %1000 = vmatpush.bf16.xpose.msra.mxu0 0
        %1001 = vmatpush.bf16.xpose.msra.mxu0 0
        %1002 = vmatpush.bf16.xpose.msra.mxu0 0
        %1003 = vmatpush.bf16.xpose.msra.mxu0 0
        %1004 = vmatpush.bf16.xpose.msra.mxu0 0
        %1005 = vmatpush.bf16.xpose.msra.mxu0 0
        %1006 = vmatpush.bf16.xpose.msra.mxu0 %v997
        %1007 = vmatmul.bf16.gmra.mxu0 %v994
        %v1008 = vpop.f32.mrf.mxu0
        %v1009 = vadd.f32 0.0, %v1008
        %v1010 = vpop.f32.mrf.mxu0
        %1011 = vdwg.mxu0
        %v1012 = vsel %vm566, %v1009, -inf
        %1013 = vmax.xlane.f32.xlu0 %v1012
        %v1014 = vpop.xlane.xlu0 %1013
        %v1015 = vsub.f32 %v1009, %v1014
        %v1016 = vmul.f32 %v1015, 1.442695
        %v1017 = vpow.pop %v1016
        %v1018 = vsel %vm566, %v1017, 0.0
        %1019 = vadd.xlane.f32.xlu0 %v1018
        %v1020 = vpop.xlane.xlu0 %1019
        %v1021 = vrcp.pop %v1020
        %v1022 = vmul.f32 %v1017, %v1021
        %v1023 = vpack.c.bf16 %v1022, %v1022
        %1024 = vrot.lane.b32.xlu0 %v809, 40
        %v1025 = vpop.permute.xlu0 %1024
        %v1027 = vsel %vm566, %v1023, 0
        %v1030 = vsel %vm603, %v1025, 0
        %1032 = vmatpush.bf16.msra.mxu0 0
        %1033 = vmatpush.bf16.msra.mxu0 0
        %1034 = vmatpush.bf16.msra.mxu0 0
        %1035 = vmatpush.bf16.msra.mxu0 0
        %1036 = vmatpush.bf16.msra.mxu0 0
        %1037 = vmatpush.bf16.msra.mxu0 0
        %1038 = vmatpush.bf16.msra.mxu0 0
        %1039 = vmatpush.bf16.msra.mxu0 %v1030
        %1040 = vmatmul.bf16.gmra.mxu0 %v1027
        %v1041 = vpop.f32.mrf.mxu0
        %v1042 = vadd.f32 0.0, %v1041
        %v1043 = vpop.f32.mrf.mxu0
        %1044 = vdwg.mxu0
        %1046 = vrot.lane.b32.xlu0 %v1042, 24
        %v1047 = vpop.permute.xlu0 %1046
        %1049 = vst.msk [vmem:[#allocation2 + $0x8] sm:$0xff] %vm806, %v1047
        %v1050 = vld [vmem:[#allocation2] sm:$0xff]
        %v1051 = vld [vmem:[#allocation2 + $0x8] sm:$0xff]
        %v1052 = vpack.c.bf16 %v1051, %v1050
        %v1053 = vld [vmem:[%s5] sm:$0xf]
        %v1054 = vld [vmem:[%s5 + $0x4] sm:$0xf]
        %v1055 = vld [vmem:[%s5 + $0x8] sm:$0xf]
        %v1056 = vld [vmem:[%s5 + $0xc] sm:$0xf]
        %v1057 = vld [vmem:[%s6] sm:$0x1]
        %v1059 = vperm.slane %v1057, 0
        %v1065 = vunpack.c.l.b16 %v1053
        %v1066 = vunpack.c.l.b16 %v1054
        %v1067 = vunpack.c.l.b16 %v1055
        %v1068 = vunpack.c.l.b16 %v1056
        %v1069 = vpack.c.b16 %v1066, %v1065
        %v1070 = vpack.c.b16 %v1068, %v1067
        %v1074 = vsel %vm459, %v1052, 0
        %1076 = vmatpush.bf16.msra.mxu0 0
        %1077 = vmatpush.bf16.msra.mxu0 0
        %1078 = vmatpush.bf16.msra.mxu0 0
        %1079 = vmatpush.bf16.msra.mxu0 0
        %1080 = vmatpush.bf16.msra.mxu0 0
        %1081 = vmatpush.bf16.msra.mxu0 0
        %1082 = vmatpush.bf16.msra.mxu0 %v1070
        %1083 = vmatpush.bf16.msra.mxu0 %v1069
        %1084 = vmatmul.bf16.gmra.mxu0 %v1074
        %v1085 = vpop.f32.mrf.mxu0
        %v1086 = vadd.f32 %v1059, %v1085
        %v1087 = vpop.f32.mrf.mxu0
        %v1088 = vadd.f32 %v1059, %v1087
        %1089 = vdwg.mxu0
        %v1090 = vadd.f32 %v455, %v1086
        %v1091 = vadd.f32 %v456, %v1088
        %v1092 = vld [vmem:[%s7] sm:$0x1]
        %v1093 = vld [vmem:[%s8] sm:$0x1]
        %v1094 = vsel %vm459, %v1090, 0.0
        %1095 = vadd.xlane.f32.xlu0 %v1094
        %v1096 = vpop.xlane.xlu0 %1095
        %v1097 = vsel %vm459, %v1091, 0.0
        %1098 = vadd.xlane.f32.xlu0 %v1097
        %v1099 = vpop.xlane.xlu0 %1098
        %v1100 = vmul.f32 %v1096, %v472
        %v1101 = vmul.f32 %v1099, %v472
        %v1102 = vsub.f32 %v1090, %v1100
        %v1103 = vsub.f32 %v1091, %v1101
        %v1104 = vmul.f32 %v1102, %v1102
        %v1105 = vmul.f32 %v1103, %v1103
        %v1106 = vsel %vm459, %v1104, 0.0
        %1107 = vadd.xlane.f32.xlu0 %v1106
        %v1108 = vpop.xlane.xlu0 %1107
        %v1109 = vsel %vm459, %v1105, 0.0
        %1110 = vadd.xlane.f32.xlu0 %v1109
        %v1111 = vpop.xlane.xlu0 %1110
        %v1112 = vmul.f32 %v1108, %v472
        %v1113 = vmul.f32 %v1111, %v472
        %v1114 = vadd.f32 %v1112, 1e-05
        %v1115 = vadd.f32 %v1113, 1e-05
        %v1116 = vrsqrt.pop %v1114
        %v1117 = vmul.f32 %v1116, %v1114
        %v1118 = vmul.f32 %v1117, %v1116
        %v1119 = vmul.f32 0.5, %v1118
        %v1120 = vsub.f32 1.5, %v1119
        %v1121 = vmul.f32 %v1116, %v1120
        %vm1122 = vweird.f32 %v1114
        %vm1123 = vweird.f32 %v1116
        %vm1124 = vmor %vm1122, %vm1123
        %v1125 = vsel %vm1124, %v1116, %v1121
        %v1126 = vrsqrt.pop %v1115
        %v1127 = vmul.f32 %v1126, %v1115
        %v1128 = vmul.f32 %v1127, %v1126
        %v1129 = vmul.f32 0.5, %v1128
        %v1130 = vsub.f32 1.5, %v1129
        %v1131 = vmul.f32 %v1126, %v1130
        %vm1132 = vweird.f32 %v1115
        %vm1133 = vweird.f32 %v1126
        %vm1134 = vmor %vm1132, %vm1133
        %v1135 = vsel %vm1134, %v1126, %v1131
        %v1136 = vmul.f32 %v1102, %v1125
        %v1137 = vmul.f32 %v1103, %v1135
        %v1139 = vperm.slane %v1092, 0
        %v1141 = vmul.f32 %v1136, %v1139
        %v1142 = vmul.f32 %v1137, %v1139
        %v1144 = vperm.slane %v1093, 0
        %v1146 = vadd.f32 %v1141, %v1144
        %v1147 = vadd.f32 %v1142, %v1144
        %v1148 = vpack.c.bf16 %v1147, %v1146
        %v1149 = vld [vmem:[%s9] sm:$0xf]
        %v1150 = vld [vmem:[%s9 + $0x4] sm:$0xf]
        %v1151 = vld [vmem:[%s9 + $0x8] sm:$0xf]
        %v1152 = vld [vmem:[%s9 + $0xc] sm:$0xf]
        %v1153 = vld [vmem:[%s10] sm:$0x1]
        %v1155 = vperm.slane %v1153, 0
        %v1161 = vunpack.c.l.b16 %v1149
        %v1162 = vunpack.c.l.b16 %v1150
        %v1163 = vunpack.c.l.b16 %v1151
        %v1164 = vunpack.c.l.b16 %v1152
        %v1165 = vpack.c.b16 %v1162, %v1161
        %v1166 = vpack.c.b16 %v1164, %v1163
        %v1170 = vsel %vm459, %v1148, 0
        %1172 = vmatpush.bf16.msra.mxu0 0
        %1173 = vmatpush.bf16.msra.mxu0 0
        %1174 = vmatpush.bf16.msra.mxu0 0
        %1175 = vmatpush.bf16.msra.mxu0 0
        %1176 = vmatpush.bf16.msra.mxu0 0
        %1177 = vmatpush.bf16.msra.mxu0 0
        %1178 = vmatpush.bf16.msra.mxu0 %v1166
        %1179 = vmatpush.bf16.msra.mxu0 %v1165
        %1180 = vmatmul.bf16.gmra.mxu0 %v1170
        %v1181 = vpop.f32.mrf.mxu0
        %v1182 = vadd.f32 %v1155, %v1181
        %v1183 = vpop.f32.mrf.mxu0
        %v1184 = vadd.f32 %v1155, %v1183
        %1185 = vdwg.mxu0
        %v1186 = vmul.f32 %v1182, 1.702
        %v1187 = vmul.f32 %v1184, 1.702
        %v1188 = vxor.u32 %v1186, 2147483648
        %v1189 = vxor.u32 %v1187, 2147483648
        %v1190 = vmul.f32 %v1188, 1.442695
        %v1191 = vpow.pop %v1190
        %v1192 = vmul.f32 %v1189, 1.442695
        %v1193 = vpow.pop %v1192
        %v1194 = vadd.f32 %v1191, 1.0
        %v1195 = vadd.f32 %v1193, 1.0
        %v1196 = vrcp.pop %v1194
        %v1197 = vmul.f32 %v1194, %v1196
        %v1198 = vsub.f32 1.0, %v1197
        %v1199 = vmul.f32 %v1196, %v1198
        %v1200 = vadd.f32 %v1196, %v1199
        %vm1201 = vweird.f32 %v1194
        %vm1202 = vweird.f32 %v1196
        %vm1203 = vmor %vm1201, %vm1202
        %v1204 = vsel %vm1203, %v1196, %v1200
        %v1205 = vand.u32 2147483647, %v1194
        %vm1206 = vcmp.eq.f32.partialorder %v1205, 8.507059e+37
        %v1207 = vand.u32 %v1194, 2147483648
        %v1208 = vor.u32 1.1754944e-38, %v1207
        %v1209 = vsel %vm1206, %v1208, %v1204
        %v1210 = vmul.f32 1.0, %v1209
        %v1211 = vrcp.pop %v1195
        %v1212 = vmul.f32 %v1195, %v1211
        %v1213 = vsub.f32 1.0, %v1212
        %v1214 = vmul.f32 %v1211, %v1213
        %v1215 = vadd.f32 %v1211, %v1214
        %vm1216 = vweird.f32 %v1195
        %vm1217 = vweird.f32 %v1211
        %vm1218 = vmor %vm1216, %vm1217
        %v1219 = vsel %vm1218, %v1211, %v1215
        %v1220 = vand.u32 2147483647, %v1195
        %vm1221 = vcmp.eq.f32.partialorder %v1220, 8.507059e+37
        %v1222 = vand.u32 %v1195, 2147483648
        %v1223 = vor.u32 1.1754944e-38, %v1222
        %v1224 = vsel %vm1221, %v1223, %v1219
        %v1225 = vmul.f32 1.0, %v1224
        %v1226 = vmul.f32 %v1182, %v1210
        %v1227 = vmul.f32 %v1184, %v1225
        %v1228 = vpack.c.bf16 %v1227, %v1226
        %v1229 = vld [vmem:[%s11] sm:$0xf]
        %v1230 = vld [vmem:[%s11 + $0x4] sm:$0xf]
        %v1231 = vld [vmem:[%s11 + $0x8] sm:$0xf]
        %v1232 = vld [vmem:[%s11 + $0xc] sm:$0xf]
        %v1233 = vld [vmem:[%s11 + $0x10] sm:$0xf]
        %v1234 = vld [vmem:[%s11 + $0x14] sm:$0xf]
        %v1235 = vld [vmem:[%s11 + $0x18] sm:$0xf]
        %v1236 = vld [vmem:[%s11 + $0x1c] sm:$0xf]
        %v1237 = vld [vmem:[%s11 + $0x20] sm:$0xf]
        %v1238 = vld [vmem:[%s11 + $0x24] sm:$0xf]
        %v1239 = vld [vmem:[%s11 + $0x28] sm:$0xf]
        %v1240 = vld [vmem:[%s11 + $0x2c] sm:$0xf]
        %v1241 = vld [vmem:[%s11 + $0x30] sm:$0xf]
        %v1242 = vld [vmem:[%s11 + $0x34] sm:$0xf]
        %v1243 = vld [vmem:[%s11 + $0x38] sm:$0xf]
        %v1244 = vld [vmem:[%s11 + $0x3c] sm:$0xf]
        %v1245 = vld [vmem:[%s12] sm:$0x1]
        %v1247 = vperm.slane %v1245, 0
        %v1265 = vunpack.c.l.b16 %v1229
        %v1266 = vunpack.c.l.b16 %v1230
        %v1267 = vunpack.c.l.b16 %v1231
        %v1268 = vunpack.c.l.b16 %v1232
        %v1269 = vunpack.c.l.b16 %v1233
        %v1270 = vunpack.c.l.b16 %v1234
        %v1271 = vunpack.c.l.b16 %v1235
        %v1272 = vunpack.c.l.b16 %v1236
        %v1273 = vunpack.c.l.b16 %v1237
        %v1274 = vunpack.c.l.b16 %v1238
        %v1275 = vunpack.c.l.b16 %v1239
        %v1276 = vunpack.c.l.b16 %v1240
        %v1277 = vunpack.c.l.b16 %v1241
        %v1278 = vunpack.c.l.b16 %v1242
        %v1279 = vunpack.c.l.b16 %v1243
        %v1280 = vunpack.c.l.b16 %v1244
        %v1281 = vpack.c.b16 %v1266, %v1265
        %v1282 = vpack.c.b16 %v1268, %v1267
        %v1283 = vpack.c.b16 %v1270, %v1269
        %v1284 = vpack.c.b16 %v1272, %v1271
        %v1285 = vpack.c.b16 %v1274, %v1273
        %v1286 = vpack.c.b16 %v1276, %v1275
        %v1287 = vpack.c.b16 %v1278, %v1277
        %v1288 = vpack.c.b16 %v1280, %v1279
        %1297 = vmatpush.bf16.msra.mxu0 %v1288
        %1298 = vmatpush.bf16.msra.mxu0 %v1287
        %1299 = vmatpush.bf16.msra.mxu0 %v1286
        %1300 = vmatpush.bf16.msra.mxu0 %v1285
        %1301 = vmatpush.bf16.msra.mxu0 %v1284
        %1302 = vmatpush.bf16.msra.mxu0 %v1283
        %1303 = vmatpush.bf16.msra.mxu0 %v1282
        %1304 = vmatpush.bf16.msra.mxu0 %v1281
        %1305 = vmatmul.bf16.gmra.mxu0 %v1228
        %v1306 = vpop.f32.mrf.mxu0
        %v1307 = vadd.f32 %v1247, %v1306
        %v1308 = vpop.f32.mrf.mxu0
        %v1309 = vadd.f32 %v1247, %v1308
        %1310 = vdwg.mxu0
        %v1311 = vadd.f32 %v1090, %v1307
        %v1312 = vadd.f32 %v1091, %v1309
        %1313 = vst.msk [vmem:[%s448] sm:$0xff] %vm459, %v1311
        %1314 = vst.msk [vmem:[%s448 + $0x8] sm:$0xff] %vm459, %v1312
        %s1315 = sand.u32 %s314, 1
        %s1316 = scalar_lea.sflag [#allocation5], %s1315
        %s1317 = sand.u32 %s314, 1
        %s1318 = smul.addr %s1317, 16
        %s1319 = scalar_lea.vmem [#allocation6], %s1318
        // Predicated region
        $region77: #{tpu_custom_call.1} parent=71 // pred_check
          %p1320 = pneg %p324
        $region78: #{tpu_custom_call.1} parent=71 // pred_check_branch
          %1322 = sbr.rel (%p1320) target = $region80
        $region79: #{tpu_custom_call.1} parent=71 // pred_region
          %1324 = vsyncadd %s1316, 0
          %s1325 = smul.addr %s28, 2
          %s1326 = smul.addr %s1325, 8
          %s1327 = scalar_lea.hbm %s13, %s1326
          %s1328 = sshll.u32 %s1319, 4
          %s1329 = int_to_ptr.vmem [resolvable:$true] %s1328
          %s1330 = sshll.u32 %s1327, 4
          %s1331 = int_to_ptr.hbm [resolvable:$true] %s1330
          %1336 = dma.vmem_to_hbm [thread:$0]  %s1329, 256, %s1331, %s1316, 128, 128, 8
        $region80: #{tpu_custom_call.1} parent=71 // pred_fallthru
          _
      $region72: #{tpu_custom_call.1} parent=5 // pred_fallthru
        _
      %p1337 = scmp.le.s32.totalorder 2, %s23
      // Predicated region
      $region81: #{tpu_custom_call.1} parent=5 // pred_check
        %p1338 = pneg %p1337
      $region82: #{tpu_custom_call.1} parent=5 // pred_check_branch
        %1340 = sbr.rel (%p1338) target = $region84
      $region83: #{tpu_custom_call.1} parent=5 // pred_region
        %s1341 = ssub.s32 %s23, 2
        // Predicated region
        $region85: #{tpu_custom_call.1} parent=83 // pred_check
          %p1342 = pneg %p330
        $region86: #{tpu_custom_call.1} parent=83 // pred_check_branch
          %1344 = sbr.rel (%p1342) target = $region88
        $region87: #{tpu_custom_call.1} parent=83 // pred_region
          %s1345 = sand.u32 %s315, 1
          %s1346 = scalar_lea.sflag [#allocation5], %s1345
          %s1347 = sand.u32 %s315, 1
          %s1348 = smul.addr %s1347, 16
          %s1349 = scalar_lea.vmem [#allocation6], %s1348
          %1351 = dma.done %s1346, 256
        $region88: #{tpu_custom_call.1} parent=83 // pred_fallthru
          _
      $region84: #{tpu_custom_call.1} parent=5 // pred_fallthru
        _
    $region6: #{tpu_custom_call.1} parent=1 // loop_footer
      %s27 = sadd.s32 1, %s23
    $region7: #{tpu_custom_call.1} parent=1 // loop_footer_branch
      %22 = sbr.rel target = $region3
    $region8: #{tpu_custom_call.1} parent=1 // loop_exit
      _
    %1352 = vsyncpa [#allocation4], 1
    %s1353 = scalar_lea.sflag [#allocation4], 1
    %1354 = vsyncpa %s1353, 1
    %1355 = vsyncpa [#allocation5], 1
    %s1356 = scalar_lea.sflag [#allocation5], 1
    %1357 = vsyncpa %s1356, 1

</llo_original>
